<compile_context>
chip_gen: v6e
topology: v6e:2x2x1
jax: 0.10.0
libtpu: 0.0.40
codegen_flags: <defaults>
</compile_context>

<pallas_src>
import functools

import jax
import jax.numpy as jnp
import numpy as np
from jax import lax
from jax.experimental import pallas as pl
from jax.experimental.pallas import tpu as pltpu


# "NT" matmul: contract the minor dim of both operands -> (Cout, M) result whose
# minor dim is M = TOH*OW (lane-dense store; output is flattened NCHW).
_NT_DIMS = (((1,), (1,)), ((), ()))


# ----------------------------------------------------------------------------
# Fused kernel: BN(eval) + ReLU + grouped conv (block-diagonal packed weight),
# one (batch, output-row-tile) block per grid step.
# ----------------------------------------------------------------------------
def _dpn_conv_kernel(x_ref, scale_ref, shift_ref, mask_ref, w_ref, o_ref, *scratch,
                     KH, KW, SH, SW, TOH, OW, Cout, mxu_dtype, apply_mask, use_slab):
    # x_ref:     (Hp, Wp, Cin)       padded NHWC image of this batch element (VMEM)
    # scale_ref: (1, Cin)            BN scale = gamma / sqrt(var + eps)
    # shift_ref: (1, Cin)            BN shift = beta - mean * scale
    # mask_ref:  (Hp, Wp)            1.0 inside the real image, 0.0 on the zero pad
    # w_ref:     (Cout, KH*KW*Cin)   block-diagonal packed conv weights (NT layout)
    # o_ref:     (Cout, TOH*OW)      output tile, flattened-NCHW layout (lane-dense)
    # scratch:   optional (TOH, OW, KH*KW*Cin) VMEM tap-slab buffer (use_slab only)
    r = pl.program_id(1)
    Cin = x_ref.shape[-1]
    TIH = (TOH - 1) * SH + KH                       # input rows feeding this tile
    h0 = pl.multiple_of(r * (TOH * SH), TOH * SH)   # sublane-aligned slice start

    # ---- BN(eval) + ReLU on the row window (f32), ONE cast to the MXU dtype ----
    xr = x_ref[pl.ds(h0, TIH), :, :].astype(jnp.float32)        # (TIH, Wp, Cin)
    scale = scale_ref[...].reshape(1, 1, Cin)
    shift = shift_ref[...].reshape(1, 1, Cin)
    xb = jnp.maximum(xr * scale + shift, 0.0)
    if apply_mask:
        # The conv pads the *post*-BN+ReLU activations with zeros; BN+ReLU of the
        # raw zero pad is generally nonzero, so zero those positions (0/1 multiply,
        # no iota/compare/select).
        xb = xb * mask_ref[pl.ds(h0, TIH), :][:, :, None]
    xb = xb.astype(mxu_dtype)

    def window(kh, kw):                              # (TOH, OW, Cin) tap window
        if SH == 1 and SW == 1:
            return xb[kh:kh + TOH, kw:kw + OW, :]
        return lax.slice(xb, (kh, kw, 0),
                         (kh + (TOH - 1) * SH + 1, kw + (OW - 1) * SW + 1, Cin),
                         (SH, SW, 1))

    if use_slab:
        # Pack all taps into one (TOH*OW, KH*KW*Cin) slab -> a single MXU matmul
        # with K = KH*KW*Cin instead of KH*KW tiny-K matmuls.
        slab_ref, = scratch
        for kh in range(KH):
            for kw in range(KW):
                t = kh * KW + kw
                slab_ref[:, :, t * Cin:(t + 1) * Cin] = window(kh, kw)
        slab = slab_ref[...].reshape(TOH * OW, KH * KW * Cin)
        res = lax.dot_general(w_ref[...], slab, _NT_DIMS,
                              preferred_element_type=jnp.float32)
    else:
        # Large-Cin fallback: tap accumulation (K = Cin is already MXU-sized).
        # TODO(synk): for very large Cout move this accumulator to a VMEM scratch.
        res = jnp.zeros((Cout, TOH * OW), jnp.float32)
        for kh in range(KH):
            for kw in range(KW):
                t = kh * KW + kw
                win2 = window(kh, kw).reshape(TOH * OW, Cin)
                res = res + lax.dot_general(w_ref[:, t * Cin:(t + 1) * Cin], win2,
                                            _NT_DIMS,
                                            preferred_element_type=jnp.float32)

    o_ref[...] = res.astype(o_ref.dtype)


def _pick_row_tile(OH, OW, KH, KW, SH, Wp, Cin, Cout,
                   m_target=256, budget_bytes=8 << 20):
    """Smallest divisor TOH of OH giving TOH*OW >= m_target (fills the MXU M dim on
    v6e/v7x), subject to a per-step VMEM working-set budget and block legality
    (TOH % 8 == 0 and TOH*OW % 128 == 0, or TOH == OH)."""
    def work_bytes(t):
        tih = (t - 1) * SH + KH
        return (tih * Wp * Cin * 4                 # BN+ReLU'd row slab (f32)
                + t * OW * KH * KW * Cin * 4       # tap slab scratch (<= f32)
                + 2 * t * OW * Cout * 4)           # matmul result + out tile
    cands = [t for t in range(1, OH + 1)
             if OH % t == 0
             and (t == OH or (t % 8 == 0 and (t * OW) % 128 == 0))]
    fitting = [t for t in cands if work_bytes(t) <= budget_bytes]
    if not fitting:
        return min(cands)
    for t in fitting:
        if t * OW >= m_target:
            return t
    return fitting[-1]


def _vmem_capacity_bytes():
    try:
        return int(pltpu.get_tpu_info().vmem_capacity_bytes)
    except Exception:
        return 64 * 1024 * 1024     # conservative (v7x per-TensorCore VMEM)


# ----------------------------------------------------------------------------
# DPNConv forward
# ----------------------------------------------------------------------------
def dpn_conv_forward(x_nchw, params, *, kernel_size, stride, padding, groups,
                     use_bf16_mxu=False):
    KH, KW = kernel_size
    SH, SW = stride
    PH, PW = padding
    eps = 1e-3

    gamma = params["gamma"].astype(jnp.float32)
    beta = params["beta"].astype(jnp.float32)
    running_mean = params["running_mean"].astype(jnp.float32)
    running_var = params["running_var"].astype(jnp.float32)
    conv_w = params["conv_weight"]              # (Cout, Cin//groups, KH, KW)

    N, Cin, H, W = x_nchw.shape
    Cout = conv_w.shape[0]
    Cpg = Cin // groups
    Coutg = Cout // groups

    OH = (H + 2 * PH - KH) // SH + 1
    OW = (W + 2 * PW - KW) // SW + 1
    Hp, Wp = H + 2 * PH, W + 2 * PW

    # BN(eval) folded into per-channel scale/shift (applied in-kernel, f32).
    scale = (gamma / jnp.sqrt(running_var + eps)).reshape(1, Cin)
    shift = beta.reshape(1, Cin) - running_mean.reshape(1, Cin) * scale

    mxu_dtype = (jnp.bfloat16
                 if (x_nchw.dtype == jnp.bfloat16 or use_bf16_mxu)
                 else jnp.float32)

    # Block-diagonal dense weight packing in NT layout:
    #   w_pack_t[cout, (kh*KW + kw)*Cin + cin] = conv_w[cout, cin_in_group, kh, kw]
    # (zero outside the group's diagonal block).
    # TODO(synk): for real DPN cardinality (G=32..50) use group-blocked packing
    #             (ceil(128 or 256 / Coutg) groups per matmul) instead of fully dense.
    w5 = conv_w.reshape(groups, Coutg, Cpg, KH, KW).astype(jnp.float32)
    w_t = jnp.transpose(w5, (3, 4, 0, 2, 1))                   # (KH, KW, G, Cpg, Coutg)
    eye = jnp.eye(groups, dtype=jnp.float32)
    w_bd = w_t[:, :, :, None, :, :] * eye[None, None, :, :, None, None]
    w_pack = jnp.transpose(w_bd, (0, 1, 2, 4, 3, 5)).reshape(KH, KW, Cin, Cout)
    w_pack_t = jnp.transpose(w_pack, (3, 0, 1, 2)).reshape(Cout, KH * KW * Cin)
    w_pack_t = w_pack_t.astype(mxu_dtype)

    # NCHW -> padded NHWC (one fused transpose+pad pass in XLA).  Output needs no
    # transpose at all (kernel writes flattened NCHW directly).
    # TODO(synk): if the surrounding graph runs NHWC, take NHWC input directly.
    x_nhwc = jnp.transpose(x_nchw, (0, 2, 3, 1))
    x_pad = jnp.pad(x_nhwc, ((0, 0), (PH, PH), (PW, PW), (0, 0)))

    apply_mask = (PH > 0) or (PW > 0)
    mask2d = jnp.pad(jnp.ones((H, W), jnp.float32), ((PH, PH), (PW, PW)))

    TOH = _pick_row_tile(OH, OW, KH, KW, SH, Wp, Cin, Cout)
    n_r = OH // TOH
    TIH = (TOH - 1) * SH + KH

    use_slab = (KH * KW > 1) and (Cin < 128) and not (
        mxu_dtype == jnp.bfloat16 and Cin % 2 == 1)
    scratch_shapes = ([pltpu.VMEM((TOH, OW, KH * KW * Cin), mxu_dtype)]
                      if use_slab else [])

    kernel = functools.partial(
        _dpn_conv_kernel,
        KH=KH, KW=KW, SH=SH, SW=SW, TOH=TOH, OW=OW, Cout=Cout,
        mxu_dtype=mxu_dtype, apply_mask=apply_mask, use_slab=use_slab)

    itemsize = jnp.dtype(x_nchw.dtype).itemsize
    mxu_itemsize = jnp.dtype(mxu_dtype).itemsize

    # VMEM working set: double-buffered padded image + out tile + weights, plus the
    # in-kernel BN slab / tap slab / result.  Limit derived from it and clamped to
    # the physical VMEM of this chip (128 MiB on v5e/v6e, 64 MiB on v7x).
    # TODO(synk): for full-size DPN stages on v7x, switch the image input to
    #             memory_space=pl.ANY with a manual row-window double-buffered DMA.
    vmem_need = (2 * Hp * Wp * Cin * itemsize
                 + 2 * TOH * OW * Cout * itemsize
                 + 2 * Cout * KH * KW * Cin * mxu_itemsize
                 + Hp * Wp * 4 + 2 * Cin * 4
                 + TIH * Wp * Cin * 4
                 + TOH * OW * KH * KW * Cin * mxu_itemsize
                 + TOH * OW * Cout * 4)
    vmem_limit = int(max(32 * 1024 * 1024,
                         min(2 * vmem_need, int(0.9 * _vmem_capacity_bytes()))))

    # Advisory cost (flops counts the dense block-diagonal matmul actually issued,
    # i.e. ~groups x the mathematically useful MACs).
    cost = pl.CostEstimate(
        flops=int(2 * N * OH * OW * KH * KW * Cin * Cout),
        transcendentals=0,
        bytes_accessed=int(N * Hp * Wp * Cin * itemsize
                           + Cout * KH * KW * Cin * mxu_itemsize
                           + N * OH * OW * Cout * itemsize
                           + Hp * Wp * 4 + 2 * Cin * 4))

    out_flat = pl.pallas_call(
        kernel,
        out_shape=jax.ShapeDtypeStruct((N, Cout, OH * OW), x_nchw.dtype),
        grid_spec=pltpu.PrefetchScalarGridSpec(
            num_scalar_prefetch=0,
            grid=(N, n_r),
            in_specs=[
                # Full padded image per batch element; block index constant across
                # row tiles -> DMA'd once per image and reused by the inner r loop.
                pl.BlockSpec((None, Hp, Wp, Cin), lambda n, r: (n, 0, 0, 0)),
                pl.BlockSpec((1, Cin), lambda n, r: (0, 0)),
                pl.BlockSpec((1, Cin), lambda n, r: (0, 0)),
                pl.BlockSpec((Hp, Wp), lambda n, r: (0, 0)),
                pl.BlockSpec((Cout, KH * KW * Cin), lambda n, r: (0, 0)),
            ],
            # Lane-dense, flattened-NCHW output tile: last dim = TOH*OW >= 128.
            out_specs=pl.BlockSpec((None, Cout, TOH * OW), lambda n, r: (n, 0, r)),
            scratch_shapes=scratch_shapes,
        ),
        compiler_params=pltpu.CompilerParams(
            dimension_semantics=("parallel", "parallel"),
            vmem_limit_bytes=vmem_limit),
        cost_estimate=cost,
    )(x_pad, scale, shift, mask2d, w_pack_t)

    # (N, Cout, OH*OW) is already NCHW order; the reshape is free metadata.
    return out_flat.reshape(N, Cout, OH, OW)


# ----------------------------------------------------------------------------
# Reference (pure JAX) for verification
# ----------------------------------------------------------------------------
def dpn_conv_reference(x_nchw, params, *, kernel_size, stride, padding, groups):
    eps = 1e-3
    gamma = params["gamma"].reshape(1, -1, 1, 1)
    beta = params["beta"].reshape(1, -1, 1, 1)
    mean = params["running_mean"].reshape(1, -1, 1, 1)
    var = params["running_var"].reshape(1, -1, 1, 1)
    y = (x_nchw - mean) / jnp.sqrt(var + eps) * gamma + beta
    y = jnp.maximum(y, 0.0)
    out = lax.conv_general_dilated(
        y, params["conv_weight"],
        window_strides=stride,
        padding=[(padding[0], padding[0]), (padding[1], padding[1])],
        dimension_numbers=("NCHW", "OIHW", "NCHW"),
        feature_group_count=groups,
    )
    return out


# ----------------------------------------------------------------------------
# Main
# ----------------------------------------------------------------------------
if __name__ == "__main__":
    # Small DPNConv config: 3x3 grouped conv, stride 1, padding 1, groups 2.
    N, Cin, H, W = 2, 8, 16, 16
    Cout = 8
    kernel_size = (3, 3)
    stride = (1, 1)
    padding = (1, 1)
    groups = 2

    key = jax.random.PRNGKey(0)
    k_x, k_g, k_b, k_m, k_v, k_w = jax.random.split(key, 6)

    x = jax.random.normal(k_x, (N, Cin, H, W), dtype=jnp.float32)

    params = {
        "gamma": 1.0 + 0.1 * jax.random.normal(k_g, (Cin,), dtype=jnp.float32),
        "beta": 0.1 * jax.random.normal(k_b, (Cin,), dtype=jnp.float32),
        "running_mean": 0.1 * jax.random.normal(k_m, (Cin,), dtype=jnp.float32),
        "running_var": 0.5 + jnp.abs(jax.random.normal(k_v, (Cin,), dtype=jnp.float32)),
        "conv_weight": 0.1 * jax.random.normal(
            k_w, (Cout, Cin // groups, kernel_size[0], kernel_size[1]),
            dtype=jnp.float32),
    }

    fwd = jax.jit(functools.partial(dpn_conv_forward, kernel_size=kernel_size,
                                    stride=stride, padding=padding, groups=groups))
    out = fwd(x, params)
    out = jax.block_until_ready(out)

    ref = dpn_conv_reference(x, params, kernel_size=kernel_size,
                             stride=stride, padding=padding, groups=groups)
    ref = jax.block_until_ready(ref)

    np.testing.assert_allclose(np.asarray(out), np.asarray(ref),
                               rtol=1e-4, atol=1e-4)
    print("KERNEL_OK")
</pallas_src>

<mosaic_0001>
module attributes {stable_mosaic.version = 11 : i64} {
  func.func @_dpn_conv_kernel(%arg0: i32, %arg1: i32, %arg2: memref<1x18x18x8xf32, #tpu.memory_space<vmem>>, %arg3: memref<1x8xf32, #tpu.memory_space<vmem>>, %arg4: memref<1x8xf32, #tpu.memory_space<vmem>>, %arg5: memref<18x18xf32, #tpu.memory_space<vmem>>, %arg6: memref<8x72xf32, #tpu.memory_space<vmem>>, %arg7: memref<1x8x256xf32, #tpu.memory_space<vmem>>, %arg8: memref<16x16x72xf32, #tpu.memory_space<vmem>>) attributes {dimension_semantics = [#tpu.dimension_semantics<parallel>, #tpu.dimension_semantics<parallel>], iteration_bounds = array<i64: 2, 1>, scalar_prefetch = 0 : i64, scratch_operands = 1 : i64, tpu.core_type = #tpu.core_type<tc>, window_params = [{transform_indices = @transform_0, window_bounds = array<i64: 1, 18, 18, 8>}, {pipeline_mode = #tpu.pipeline_mode<synchronous>, transform_indices = @transform_1, window_bounds = array<i64: 1, 8>}, {pipeline_mode = #tpu.pipeline_mode<synchronous>, transform_indices = @transform_2, window_bounds = array<i64: 1, 8>}, {pipeline_mode = #tpu.pipeline_mode<synchronous>, transform_indices = @transform_3, window_bounds = array<i64: 18, 18>}, {pipeline_mode = #tpu.pipeline_mode<synchronous>, transform_indices = @transform_4, window_bounds = array<i64: 8, 72>}, {transform_indices = @transform_5, window_bounds = array<i64: 1, 8, 256>}]} {
    %c16_i32 = arith.constant 16 : i32
    %0 = arith.muli %arg1, %c16_i32 : i32
    %1 = tpu.assume_multiple %0, 16 : i32
    %c0 = arith.constant 0 : index
    %2 = arith.index_cast %1 : i32 to index
    %c0_0 = arith.constant 0 : index
    %c0_1 = arith.constant 0 : index
    %3 = vector.load %arg2[%c0, %2, %c0_0, %c0_1] : memref<1x18x18x8xf32, #tpu.memory_space<vmem>>, vector<1x18x18x8xf32>
    %4 = vector.shape_cast %3 : vector<1x18x18x8xf32> to vector<18x18x8xf32>
    %c0_2 = arith.constant 0 : index
    %c0_3 = arith.constant 0 : index
    %5 = vector.load %arg3[%c0_2, %c0_3] : memref<1x8xf32, #tpu.memory_space<vmem>>, vector<1x8xf32>
    %6 = vector.shape_cast %5 : vector<1x8xf32> to vector<1x1x8xf32>
    %c0_4 = arith.constant 0 : index
    %c0_5 = arith.constant 0 : index
    %7 = vector.load %arg4[%c0_4, %c0_5] : memref<1x8xf32, #tpu.memory_space<vmem>>, vector<1x8xf32>
    %8 = vector.shape_cast %7 : vector<1x8xf32> to vector<1x1x8xf32>
    %9 = vector.broadcast %6 : vector<1x1x8xf32> to vector<18x18x8xf32>
    %10 = arith.mulf %4, %9 : vector<18x18x8xf32>
    %11 = vector.broadcast %8 : vector<1x1x8xf32> to vector<18x18x8xf32>
    %12 = arith.addf %10, %11 : vector<18x18x8xf32>
    %cst = arith.constant 0.000000e+00 : f32
    %13 = vector.broadcast %cst : f32 to vector<18x18x8xf32>
    %14 = arith.maximumf %12, %13 : vector<18x18x8xf32>
    %15 = arith.index_cast %1 : i32 to index
    %c0_6 = arith.constant 0 : index
    %16 = vector.load %arg5[%15, %c0_6] : memref<18x18xf32, #tpu.memory_space<vmem>>, vector<18x18xf32>
    %17 = vector.shape_cast %16 : vector<18x18xf32> to vector<18x18x1xf32>
    %18 = vector.broadcast %17 : vector<18x18x1xf32> to vector<18x18x8xf32>
    %19 = arith.mulf %14, %18 : vector<18x18x8xf32>
    %20 = vector.extract_strided_slice %19 {offsets = [0, 0, 0], sizes = [16, 16, 8], strides = [1, 1, 1]} : vector<18x18x8xf32> to vector<16x16x8xf32>
    %c0_7 = arith.constant 0 : index
    %c0_8 = arith.constant 0 : index
    %c0_9 = arith.constant 0 : index
    %21 = vector.load %arg8[%c0_7, %c0_8, %c0_9] : memref<16x16x72xf32, #tpu.memory_space<vmem>>, vector<16x16x8xf32>
    tpu.vector_store %arg8[%c0_7, %c0_8, %c0_9], %20 {strides = array<i32>} : memref<16x16x72xf32, #tpu.memory_space<vmem>>, vector<16x16x8xf32>,
    %22 = vector.extract_strided_slice %19 {offsets = [0, 1, 0], sizes = [16, 16, 8], strides = [1, 1, 1]} : vector<18x18x8xf32> to vector<16x16x8xf32>
    %c0_10 = arith.constant 0 : index
    %c0_11 = arith.constant 0 : index
    %c8 = arith.constant 8 : index
    %23 = vector.load %arg8[%c0_10, %c0_11, %c8] : memref<16x16x72xf32, #tpu.memory_space<vmem>>, vector<16x16x8xf32>
    tpu.vector_store %arg8[%c0_10, %c0_11, %c8], %22 {strides = array<i32>} : memref<16x16x72xf32, #tpu.memory_space<vmem>>, vector<16x16x8xf32>,
    %24 = vector.extract_strided_slice %19 {offsets = [0, 2, 0], sizes = [16, 16, 8], strides = [1, 1, 1]} : vector<18x18x8xf32> to vector<16x16x8xf32>
    %c0_12 = arith.constant 0 : index
    %c0_13 = arith.constant 0 : index
    %c16 = arith.constant 16 : index
    %25 = vector.load %arg8[%c0_12, %c0_13, %c16] : memref<16x16x72xf32, #tpu.memory_space<vmem>>, vector<16x16x8xf32>
    tpu.vector_store %arg8[%c0_12, %c0_13, %c16], %24 {strides = array<i32>} : memref<16x16x72xf32, #tpu.memory_space<vmem>>, vector<16x16x8xf32>,
    %26 = vector.extract_strided_slice %19 {offsets = [1, 0, 0], sizes = [16, 16, 8], strides = [1, 1, 1]} : vector<18x18x8xf32> to vector<16x16x8xf32>
    %c0_14 = arith.constant 0 : index
    %c0_15 = arith.constant 0 : index
    %c24 = arith.constant 24 : index
    %27 = vector.load %arg8[%c0_14, %c0_15, %c24] : memref<16x16x72xf32, #tpu.memory_space<vmem>>, vector<16x16x8xf32>
    tpu.vector_store %arg8[%c0_14, %c0_15, %c24], %26 {strides = array<i32>} : memref<16x16x72xf32, #tpu.memory_space<vmem>>, vector<16x16x8xf32>,
    %28 = vector.extract_strided_slice %19 {offsets = [1, 1, 0], sizes = [16, 16, 8], strides = [1, 1, 1]} : vector<18x18x8xf32> to vector<16x16x8xf32>
    %c0_16 = arith.constant 0 : index
    %c0_17 = arith.constant 0 : index
    %c32 = arith.constant 32 : index
    %29 = vector.load %arg8[%c0_16, %c0_17, %c32] : memref<16x16x72xf32, #tpu.memory_space<vmem>>, vector<16x16x8xf32>
    tpu.vector_store %arg8[%c0_16, %c0_17, %c32], %28 {strides = array<i32>} : memref<16x16x72xf32, #tpu.memory_space<vmem>>, vector<16x16x8xf32>,
    %30 = vector.extract_strided_slice %19 {offsets = [1, 2, 0], sizes = [16, 16, 8], strides = [1, 1, 1]} : vector<18x18x8xf32> to vector<16x16x8xf32>
    %c0_18 = arith.constant 0 : index
    %c0_19 = arith.constant 0 : index
    %c40 = arith.constant 40 : index
    %31 = vector.load %arg8[%c0_18, %c0_19, %c40] : memref<16x16x72xf32, #tpu.memory_space<vmem>>, vector<16x16x8xf32>
    tpu.vector_store %arg8[%c0_18, %c0_19, %c40], %30 {strides = array<i32>} : memref<16x16x72xf32, #tpu.memory_space<vmem>>, vector<16x16x8xf32>,
    %32 = vector.extract_strided_slice %19 {offsets = [2, 0, 0], sizes = [16, 16, 8], strides = [1, 1, 1]} : vector<18x18x8xf32> to vector<16x16x8xf32>
    %c0_20 = arith.constant 0 : index
    %c0_21 = arith.constant 0 : index
    %c48 = arith.constant 48 : index
    %33 = vector.load %arg8[%c0_20, %c0_21, %c48] : memref<16x16x72xf32, #tpu.memory_space<vmem>>, vector<16x16x8xf32>
    tpu.vector_store %arg8[%c0_20, %c0_21, %c48], %32 {strides = array<i32>} : memref<16x16x72xf32, #tpu.memory_space<vmem>>, vector<16x16x8xf32>,
    %34 = vector.extract_strided_slice %19 {offsets = [2, 1, 0], sizes = [16, 16, 8], strides = [1, 1, 1]} : vector<18x18x8xf32> to vector<16x16x8xf32>
    %c0_22 = arith.constant 0 : index
    %c0_23 = arith.constant 0 : index
    %c56 = arith.constant 56 : index
    %35 = vector.load %arg8[%c0_22, %c0_23, %c56] : memref<16x16x72xf32, #tpu.memory_space<vmem>>, vector<16x16x8xf32>
    tpu.vector_store %arg8[%c0_22, %c0_23, %c56], %34 {strides = array<i32>} : memref<16x16x72xf32, #tpu.memory_space<vmem>>, vector<16x16x8xf32>,
    %36 = vector.extract_strided_slice %19 {offsets = [2, 2, 0], sizes = [16, 16, 8], strides = [1, 1, 1]} : vector<18x18x8xf32> to vector<16x16x8xf32>
    %c0_24 = arith.constant 0 : index
    %c0_25 = arith.constant 0 : index
    %c64 = arith.constant 64 : index
    %37 = vector.load %arg8[%c0_24, %c0_25, %c64] : memref<16x16x72xf32, #tpu.memory_space<vmem>>, vector<16x16x8xf32>
    tpu.vector_store %arg8[%c0_24, %c0_25, %c64], %36 {strides = array<i32>} : memref<16x16x72xf32, #tpu.memory_space<vmem>>, vector<16x16x8xf32>,
    %c0_26 = arith.constant 0 : index
    %c0_27 = arith.constant 0 : index
    %c0_28 = arith.constant 0 : index
    %38 = vector.load %arg8[%c0_26, %c0_27, %c0_28] : memref<16x16x72xf32, #tpu.memory_space<vmem>>, vector<16x16x72xf32>
    %39 = vector.shape_cast %38 : vector<16x16x72xf32> to vector<256x72xf32>
    %c0_29 = arith.constant 0 : index
    %c0_30 = arith.constant 0 : index
    %40 = vector.load %arg6[%c0_29, %c0_30] : memref<8x72xf32, #tpu.memory_space<vmem>>, vector<8x72xf32>
    %cst_31 = arith.constant dense<0.000000e+00> : vector<8x256xf32>
    %41 = tpu.matmul %40, %39, %cst_31 {dimension_numbers = #tpu.dot_dimension_numbers<[1], [1], [0], [0], [0, 0, 1, 0], [], []>} : vector<8x72xf32>, vector<256x72xf32>, vector<8x256xf32> -> vector<8x256xf32>
    %c0_32 = arith.constant 0 : index
    %c0_33 = arith.constant 0 : index
    %c0_34 = arith.constant 0 : index
    %42 = vector.load %arg7[%c0_32, %c0_33, %c0_34] : memref<1x8x256xf32, #tpu.memory_space<vmem>>, vector<1x8x256xf32>
    %43 = vector.shape_cast %42 : vector<1x8x256xf32> to vector<8x256xf32>
    %44 = vector.shape_cast %41 : vector<8x256xf32> to vector<1x8x256xf32>
    tpu.vector_store %arg7[%c0_32, %c0_33, %c0_34], %44 {strides = array<i32>} : memref<1x8x256xf32, #tpu.memory_space<vmem>>, vector<1x8x256xf32>,
    return
  }
  func.func @transform_0(%arg0: i32, %arg1: i32) -> (i32, i32, i32, i32) {
    %c0_i32 = arith.constant 0 : i32
    %c0_i32_0 = arith.constant 0 : i32
    %c0_i32_1 = arith.constant 0 : i32
    %c0_i32_2 = arith.constant 0 : i32
    return %arg0, %c0_i32, %c0_i32_0, %c0_i32_1 : i32, i32, i32, i32
  }
  func.func @transform_1(%arg0: i32, %arg1: i32) -> (i32, i32) {
    %c0_i32 = arith.constant 0 : i32
    %c0_i32_0 = arith.constant 0 : i32
    %c0_i32_1 = arith.constant 0 : i32
    return %c0_i32, %c0_i32_0 : i32, i32
  }
  func.func @transform_2(%arg0: i32, %arg1: i32) -> (i32, i32) {
    %c0_i32 = arith.constant 0 : i32
    %c0_i32_0 = arith.constant 0 : i32
    %c0_i32_1 = arith.constant 0 : i32
    return %c0_i32, %c0_i32_0 : i32, i32
  }
  func.func @transform_3(%arg0: i32, %arg1: i32) -> (i32, i32) {
    %c0_i32 = arith.constant 0 : i32
    %c0_i32_0 = arith.constant 0 : i32
    %c0_i32_1 = arith.constant 0 : i32
    return %c0_i32, %c0_i32_0 : i32, i32
  }
  func.func @transform_4(%arg0: i32, %arg1: i32) -> (i32, i32) {
    %c0_i32 = arith.constant 0 : i32
    %c0_i32_0 = arith.constant 0 : i32
    %c0_i32_1 = arith.constant 0 : i32
    return %c0_i32, %c0_i32_0 : i32, i32
  }
  func.func @transform_5(%arg0: i32, %arg1: i32) -> (i32, i32, i32) {
    %c0_i32 = arith.constant 0 : i32
    %c0_i32_0 = arith.constant 0 : i32
    return %arg0, %c0_i32, %arg1 : i32, i32, i32
  }
}

</mosaic_0001>

<llo_original>
// kernel: dpn_conv_forward.1
$region0: #{dpn_conv_forward.1}
  #allocation0 [shape = 'u32[]', space=smem, size = 0x4, offset = 0x4, fixed_abs, tag = 'smem constant byte address 0x4 - core index']
  #allocation1 [shape = 'u32[144,128]{1,0:T(1,128)}', space=vmem, size = 0x12000, scoped, tag = 'internal scratch']
  #allocation2 [shape = 'f32[16,16,72]{2,1,0:T(8,128)}', space=vmem, size = 0x20000, scoped, tag = 'scratch operand']
  %s0 = inlined_call_operand.vmem [shape: f32[2,18,18,8], index: 0, kind: input, shape index: {}]
  %s1 = inlined_call_operand.vmem [shape: f32[1,8], index: 1, kind: input, shape index: {}]
  %s2 = inlined_call_operand.vmem [shape: f32[1,8], index: 2, kind: input, shape index: {}]
  %s3 = inlined_call_operand.vmem [shape: f32[18,18], index: 3, kind: input, shape index: {}]
  %s4 = inlined_call_operand.vmem [shape: f32[8,72], index: 4, kind: input, shape index: {}]
  %s5 = inlined_call_operand.vmem [shape: f32[2,8,256], index: 5, kind: output, shape index: {}]
  %s6 = sld [smem:[#allocation0]]
  $region53: #{dpn_conv_forward.1} parent=0
    _
  %s8 = ssub.s32 1, %s6
  %s9 = scalar_select 0, %s8, %s6
  loop: start=0, step=1, limit=4
  $region2: #{dpn_conv_forward.1} parent=0 // loop_pre_header
    _
  $region3: #{dpn_conv_forward.1} parent=0 // loop_header
    %s11 = sphi 0, %s15
    %p12 = scmp.ge.s32.totalorder %s11, 4
    %s18 = sphi 0, %s30
    %s19 = sphi 0, %s26
    %s20 = sphi 0, %s18
    %s21 = sphi 0, %s19
    %s22 = sphi 0, %s20
    %s23 = sphi 0, %s21
    %s33 = sphi 0, %s35
    %s36 = sphi 0, %s33
    %s37 = sphi 0, %s36
    %s53 = sphi 0, %s37
    %s57 = sphi 0, %s57
    %s59 = sphi 0, %s57
    %s60 = sphi 0, %s59
    %s74 = sphi 0, %s60
    %s78 = sphi 0, %s78
    %s80 = sphi 0, %s78
    %s81 = sphi 0, %s80
    %s95 = sphi 0, %s81
    %s99 = sphi 0, %s99
    %s101 = sphi 0, %s99
    %s102 = sphi 0, %s101
    %s116 = sphi 0, %s102
    %s120 = sphi 0, %s120
    %s122 = sphi 0, %s120
    %s123 = sphi 0, %s122
    %s137 = sphi 0, %s123
    %s145 = sphi 0, %s147
    %s148 = sphi 0, %s145
    %s149 = sphi 0, %s148
    %s165 = sphi 0, %s149
  $region4: #{dpn_conv_forward.1} parent=0 // loop_header_branch
    %14 = sbr.rel (%p12) target = $region8
  $region5: #{dpn_conv_forward.1} parent=0 // loop_body
    %s16 = ssub.s32 %s11, 1
    %s17 = ssub.s32 %s11, 2
    %s24 = sadd.s32 1, %s19
    %p25 = scmp.ge.s32.totalorder %s24, 1
    %s26 = scalar_select %p25, 0, %s24
    %s27 = sadd.s32 1, %s18
    %s28 = scalar_select %p25, %s27, %s18
    %p29 = scmp.ge.s32.totalorder %s28, 2
    %s30 = scalar_select %p29, 0, %s28
    %s31 = ssub.s32 %s18, %s30
    %p32 = scmp.eq.s32.totalorder %s31, 0
    %s34 = sadd.s32 %s33, 1
    %s35 = scalar_select %p32, %s33, %s34
    %p38 = pneg %p32
    %p39 = scmp.eq.s32.totalorder %s11, 1
    %p40 = por %p38, %p39
    %p41 = scmp.ne.s32.totalorder %s33, %s36
    %p42 = scmp.eq.s32.totalorder %s11, 0
    %p43 = por %p41, %p42
    %p44 = scmp.ne.s32.totalorder %s33, %s36
    %p45 = scmp.eq.s32.totalorder %s16, 1
    %p46 = por %p44, %p45
    %p47 = scmp.ne.s32.totalorder %s36, %s37
    %p48 = scmp.eq.s32.totalorder %s16, 0
    %p49 = por %p47, %p48
    %p50 = scmp.ne.s32.totalorder %s36, %s37
    %p51 = scmp.eq.s32.totalorder %s17, 1
    %p52 = por %p50, %p51
    %p54 = scmp.ne.s32.totalorder %s37, %s53
    %p55 = scmp.eq.s32.totalorder %s17, 0
    %p56 = por %p54, %p55
    %s58 = sadd.s32 %s57, 1
    %p61 = scmp.eq.s32.totalorder %s11, 1
    %p62 = scmp.ne.s32.totalorder %s57, %s59
    %p63 = scmp.eq.s32.totalorder %s11, 0
    %p64 = por %p62, %p63
    %p65 = scmp.ne.s32.totalorder %s57, %s59
    %p66 = scmp.eq.s32.totalorder %s16, 1
    %p67 = por %p65, %p66
    %p68 = scmp.ne.s32.totalorder %s59, %s60
    %p69 = scmp.eq.s32.totalorder %s16, 0
    %p70 = por %p68, %p69
    %p71 = scmp.ne.s32.totalorder %s59, %s60
    %p72 = scmp.eq.s32.totalorder %s17, 1
    %p73 = por %p71, %p72
    %p75 = scmp.ne.s32.totalorder %s60, %s74
    %p76 = scmp.eq.s32.totalorder %s17, 0
    %p77 = por %p75, %p76
    %s79 = sadd.s32 %s78, 1
    %p82 = scmp.eq.s32.totalorder %s11, 1
    %p83 = scmp.ne.s32.totalorder %s78, %s80
    %p84 = scmp.eq.s32.totalorder %s11, 0
    %p85 = por %p83, %p84
    %p86 = scmp.ne.s32.totalorder %s78, %s80
    %p87 = scmp.eq.s32.totalorder %s16, 1
    %p88 = por %p86, %p87
    %p89 = scmp.ne.s32.totalorder %s80, %s81
    %p90 = scmp.eq.s32.totalorder %s16, 0
    %p91 = por %p89, %p90
    %p92 = scmp.ne.s32.totalorder %s80, %s81
    %p93 = scmp.eq.s32.totalorder %s17, 1
    %p94 = por %p92, %p93
    %p96 = scmp.ne.s32.totalorder %s81, %s95
    %p97 = scmp.eq.s32.totalorder %s17, 0
    %p98 = por %p96, %p97
    %s100 = sadd.s32 %s99, 1
    %p103 = scmp.eq.s32.totalorder %s11, 1
    %p104 = scmp.ne.s32.totalorder %s99, %s101
    %p105 = scmp.eq.s32.totalorder %s11, 0
    %p106 = por %p104, %p105
    %p107 = scmp.ne.s32.totalorder %s99, %s101
    %p108 = scmp.eq.s32.totalorder %s16, 1
    %p109 = por %p107, %p108
    %p110 = scmp.ne.s32.totalorder %s101, %s102
    %p111 = scmp.eq.s32.totalorder %s16, 0
    %p112 = por %p110, %p111
    %p113 = scmp.ne.s32.totalorder %s101, %s102
    %p114 = scmp.eq.s32.totalorder %s17, 1
    %p115 = por %p113, %p114
    %p117 = scmp.ne.s32.totalorder %s102, %s116
    %p118 = scmp.eq.s32.totalorder %s17, 0
    %p119 = por %p117, %p118
    %s121 = sadd.s32 %s120, 1
    %p124 = scmp.eq.s32.totalorder %s11, 1
    %p125 = scmp.ne.s32.totalorder %s120, %s122
    %p126 = scmp.eq.s32.totalorder %s11, 0
    %p127 = por %p125, %p126
    %p128 = scmp.ne.s32.totalorder %s120, %s122
    %p129 = scmp.eq.s32.totalorder %s16, 1
    %p130 = por %p128, %p129
    %p131 = scmp.ne.s32.totalorder %s122, %s123
    %p132 = scmp.eq.s32.totalorder %s16, 0
    %p133 = por %p131, %p132
    %p134 = scmp.ne.s32.totalorder %s122, %s123
    %p135 = scmp.eq.s32.totalorder %s17, 1
    %p136 = por %p134, %p135
    %p138 = scmp.ne.s32.totalorder %s123, %s137
    %p139 = scmp.eq.s32.totalorder %s17, 0
    %p140 = por %p138, %p139
    %s141 = ssub.s32 %s18, %s30
    %s142 = ssub.s32 %s19, %s26
    %s143 = sor.u32 %s141, %s142
    %p144 = scmp.eq.s32.totalorder %s143, 0
    %s146 = sadd.s32 %s145, 1
    %s147 = scalar_select %p144, %s145, %s146
    %p150 = pneg %p144
    %p151 = scmp.eq.s32.totalorder %s11, 1
    %p152 = por %p150, %p151
    %p153 = scmp.ne.s32.totalorder %s145, %s148
    %p154 = scmp.eq.s32.totalorder %s11, 0
    %p155 = por %p153, %p154
    %p156 = scmp.ne.s32.totalorder %s145, %s148
    %p157 = scmp.eq.s32.totalorder %s16, 1
    %p158 = por %p156, %p157
    %p159 = scmp.ne.s32.totalorder %s148, %s149
    %p160 = scmp.eq.s32.totalorder %s16, 0
    %p161 = por %p159, %p160
    %p162 = scmp.ne.s32.totalorder %s148, %s149
    %p163 = scmp.eq.s32.totalorder %s17, 1
    %p164 = por %p162, %p163
    %p166 = scmp.ne.s32.totalorder %s149, %s165
    %p167 = scmp.eq.s32.totalorder %s17, 0
    %p168 = por %p166, %p167
    %p169 = scmp.le.s32.totalorder 1, %s11
    %p170 = scmp.lt.s32.totalorder %s11, 3
    %p171 = pnand %p169, %p170
    %p172 = pneg %p171
    // Predicated region
    $region9: #{dpn_conv_forward.1} parent=5 // pred_check
      _
    $region10: #{dpn_conv_forward.1} parent=5 // pred_check_branch
      %174 = sbr.rel (%p171) target = $region12
    $region11: #{dpn_conv_forward.1} parent=5 // pred_region
      %s175 = ssub.s32 %s11, 1
      // Predicated region
      $region13: #{dpn_conv_forward.1} parent=11 // pred_check
        %p176 = pneg %p70
      $region14: #{dpn_conv_forward.1} parent=11 // pred_check_branch
        %178 = sbr.rel (%p176) target = $region16
      $region15: #{dpn_conv_forward.1} parent=11 // pred_region
        _
      $region16: #{dpn_conv_forward.1} parent=11 // pred_fallthru
        _
      // Predicated region
      $region17: #{dpn_conv_forward.1} parent=11 // pred_check
        %p179 = pneg %p91
      $region18: #{dpn_conv_forward.1} parent=11 // pred_check_branch
        %181 = sbr.rel (%p179) target = $region20
      $region19: #{dpn_conv_forward.1} parent=11 // pred_region
        _
      $region20: #{dpn_conv_forward.1} parent=11 // pred_fallthru
        _
      // Predicated region
      $region21: #{dpn_conv_forward.1} parent=11 // pred_check
        %p182 = pneg %p112
      $region22: #{dpn_conv_forward.1} parent=11 // pred_check_branch
        %184 = sbr.rel (%p182) target = $region24
      $region23: #{dpn_conv_forward.1} parent=11 // pred_region
        _
      $region24: #{dpn_conv_forward.1} parent=11 // pred_fallthru
        _
      // Predicated region
      $region25: #{dpn_conv_forward.1} parent=11 // pred_check
        %p185 = pneg %p133
      $region26: #{dpn_conv_forward.1} parent=11 // pred_check_branch
        %187 = sbr.rel (%p185) target = $region28
      $region27: #{dpn_conv_forward.1} parent=11 // pred_region
        _
      $region28: #{dpn_conv_forward.1} parent=11 // pred_fallthru
        _
    $region12: #{dpn_conv_forward.1} parent=5 // pred_fallthru
      _
    %p188 = scmp.lt.s32.totalorder %s11, 2
    // Predicated region
    $region29: #{dpn_conv_forward.1} parent=5 // pred_check
      %p189 = pneg %p188
    $region30: #{dpn_conv_forward.1} parent=5 // pred_check_branch
      %191 = sbr.rel (%p189) target = $region32
    $region31: #{dpn_conv_forward.1} parent=5 // pred_region
      // Predicated region
      $region33: #{dpn_conv_forward.1} parent=31 // pred_check
        %p192 = pneg %p43
      $region34: #{dpn_conv_forward.1} parent=31 // pred_check_branch
        %194 = sbr.rel (%p192) target = $region36
      $region35: #{dpn_conv_forward.1} parent=31 // pred_region
        %p195 = scmp.lt.s32.totalorder %s18, 1
        %s196 = scalar_select %p195, %s18, 1
        %s197 = smul.addr %s196, 54
        %s198 = smul.addr %s197, 8
        %s199 = scalar_lea.vmem %s0, %s198
      $region36: #{dpn_conv_forward.1} parent=31 // pred_fallthru
        _
    $region32: #{dpn_conv_forward.1} parent=5 // pred_fallthru
      _
    %p200 = scmp.le.s32.totalorder 1, %s11
    %p201 = scmp.lt.s32.totalorder %s11, 3
    %p202 = pnand %p200, %p201
    %p203 = pneg %p202
    // Predicated region
    $region37: #{dpn_conv_forward.1} parent=5 // pred_check
      _
    $region38: #{dpn_conv_forward.1} parent=5 // pred_check_branch
      %205 = sbr.rel (%p202) target = $region40
    $region39: #{dpn_conv_forward.1} parent=5 // pred_region
      %s206 = ssub.s32 %s11, 1
      %p207 = scmp.lt.s32.totalorder %s20, 1
      %s208 = scalar_select %p207, %s20, 1
      %s209 = smul.addr %s208, 54
      %s210 = smul.addr %s209, 8
      %s211 = scalar_lea.vmem %s0, %s210
      %p212 = pneg %p49
      %p213 = pneg %p46
      %p214 = pneg %p70
      %p215 = pneg %p67
      %p216 = pneg %p91
      %p217 = pneg %p88
      %p218 = pneg %p112
      %p219 = pneg %p109
      %p220 = pneg %p133
      %p221 = pneg %p130
      %p222 = pneg %p161
      %p223 = pneg %p158
      %s224 = smul.u32 2, %s21
      %p225 = scmp.lt.s32.totalorder %s20, 1
      %s226 = scalar_select %p225, %s20, 1
      %p227 = scmp.lt.s32.totalorder %s224, 1
      %s228 = scalar_select %p227, %s224, 1
      %s229 = smul.addr %s226, 2
      %s230 = sadd.s32 %s228, %s229
      %s231 = smul.addr %s230, 8
      %s232 = scalar_lea.vmem %s5, %s231
      %p233 = scmp.lt.s32.totalorder %s20, 1
      %s234 = scalar_select %p233, %s20, 1
      %s235 = smul.addr %s234, 54
      %s236 = smul.addr %s235, 8
      %s237 = scalar_lea.vmem %s0, %s236
      %s238 = smul.u32 2, %s21
      %p239 = scmp.lt.s32.totalorder %s20, 1
      %s240 = scalar_select %p239, %s20, 1
      %p241 = scmp.lt.s32.totalorder %s238, 1
      %s242 = scalar_select %p241, %s238, 1
      %s243 = smul.addr %s240, 2
      %s244 = sadd.s32 %s242, %s243
      %s245 = smul.addr %s244, 8
      %s246 = scalar_lea.vmem %s5, %s245
      %s247 = smul.u32 2, %s21
      %s248 = smul.u32 %s21, 16
      %s249 = smul.u32 %s248, 24
      %s250 = scalar_lea.vmem %s237, %s249
      %v251 = vld [vmem:[%s250] sm:$0xff]
      %v252 = vld [vmem:[%s250 + $0x8] sm:$0xff]
      %v253 = vld [vmem:[%s250 + $0x10] sm:$0x3]
      %v254 = vld [vmem:[%s250 + $0x18] sm:$0xff]
      %v255 = vld [vmem:[%s250 + $0x20] sm:$0xff]
      %v256 = vld [vmem:[%s250 + $0x28] sm:$0x3]
      %v257 = vld [vmem:[%s250 + $0x30] sm:$0xff]
      %v258 = vld [vmem:[%s250 + $0x38] sm:$0xff]
      %v259 = vld [vmem:[%s250 + $0x40] sm:$0x3]
      %v260 = vld [vmem:[%s250 + $0x48] sm:$0xff]
      %v261 = vld [vmem:[%s250 + $0x50] sm:$0xff]
      %v262 = vld [vmem:[%s250 + $0x58] sm:$0x3]
      %v263 = vld [vmem:[%s250 + $0x60] sm:$0xff]
      %v264 = vld [vmem:[%s250 + $0x68] sm:$0xff]
      %v265 = vld [vmem:[%s250 + $0x70] sm:$0x3]
      %v266 = vld [vmem:[%s250 + $0x78] sm:$0xff]
      %v267 = vld [vmem:[%s250 + $0x80] sm:$0xff]
      %v268 = vld [vmem:[%s250 + $0x88] sm:$0x3]
      %v269 = vld [vmem:[%s250 + $0x90] sm:$0xff]
      %v270 = vld [vmem:[%s250 + $0x98] sm:$0xff]
      %v271 = vld [vmem:[%s250 + $0xa0] sm:$0x3]
      %v272 = vld [vmem:[%s250 + $0xa8] sm:$0xff]
      %v273 = vld [vmem:[%s250 + $0xb0] sm:$0xff]
      %v274 = vld [vmem:[%s250 + $0xb8] sm:$0x3]
      %v275 = vld [vmem:[%s250 + $0xc0] sm:$0xff]
      %v276 = vld [vmem:[%s250 + $0xc8] sm:$0xff]
      %v277 = vld [vmem:[%s250 + $0xd0] sm:$0x3]
      %v278 = vld [vmem:[%s250 + $0xd8] sm:$0xff]
      %v279 = vld [vmem:[%s250 + $0xe0] sm:$0xff]
      %v280 = vld [vmem:[%s250 + $0xe8] sm:$0x3]
      %v281 = vld [vmem:[%s250 + $0xf0] sm:$0xff]
      %v282 = vld [vmem:[%s250 + $0xf8] sm:$0xff]
      %v283 = vld [vmem:[%s250 + $0x100] sm:$0x3]
      %v284 = vld [vmem:[%s250 + $0x108] sm:$0xff]
      %v285 = vld [vmem:[%s250 + $0x110] sm:$0xff]
      %v286 = vld [vmem:[%s250 + $0x118] sm:$0x3]
      %v287 = vld [vmem:[%s250 + $0x120] sm:$0xff]
      %v288 = vld [vmem:[%s250 + $0x128] sm:$0xff]
      %v289 = vld [vmem:[%s250 + $0x130] sm:$0x3]
      %v290 = vld [vmem:[%s250 + $0x138] sm:$0xff]
      %v291 = vld [vmem:[%s250 + $0x140] sm:$0xff]
      %v292 = vld [vmem:[%s250 + $0x148] sm:$0x3]
      %v293 = vld [vmem:[%s250 + $0x150] sm:$0xff]
      %v294 = vld [vmem:[%s250 + $0x158] sm:$0xff]
      %v295 = vld [vmem:[%s250 + $0x160] sm:$0x3]
      %v296 = vld [vmem:[%s250 + $0x168] sm:$0xff]
      %v297 = vld [vmem:[%s250 + $0x170] sm:$0xff]
      %v298 = vld [vmem:[%s250 + $0x178] sm:$0x3]
      %v299 = vld [vmem:[%s250 + $0x180] sm:$0xff]
      %v300 = vld [vmem:[%s250 + $0x188] sm:$0xff]
      %v301 = vld [vmem:[%s250 + $0x190] sm:$0x3]
      %v302 = vld [vmem:[%s250 + $0x198] sm:$0xff]
      %v303 = vld [vmem:[%s250 + $0x1a0] sm:$0xff]
      %v304 = vld [vmem:[%s250 + $0x1a8] sm:$0x3]
      %v305 = vld [vmem:[%s1] sm:$0x1]
      %v306 = vld [vmem:[%s2] sm:$0x1]
      %v308 = vlaneseq
      %v309 = vshrl.u32 %v308, 7
      %v310 = vsub.s32 0, %v309
      %v311 = vrot.slane %v305, %v310
      %v313 = vmul.f32 %v251, %v311
      %v314 = vmul.f32 %v252, %v311
      %v315 = vmul.f32 %v253, %v311
      %v316 = vmul.f32 %v254, %v311
      %v317 = vmul.f32 %v255, %v311
      %v318 = vmul.f32 %v256, %v311
      %v319 = vmul.f32 %v257, %v311
      %v320 = vmul.f32 %v258, %v311
      %v321 = vmul.f32 %v259, %v311
      %v322 = vmul.f32 %v260, %v311
      %v323 = vmul.f32 %v261, %v311
      %v324 = vmul.f32 %v262, %v311
      %v325 = vmul.f32 %v263, %v311
      %v326 = vmul.f32 %v264, %v311
      %v327 = vmul.f32 %v265, %v311
      %v328 = vmul.f32 %v266, %v311
      %v329 = vmul.f32 %v267, %v311
      %v330 = vmul.f32 %v268, %v311
      %v331 = vmul.f32 %v269, %v311
      %v332 = vmul.f32 %v270, %v311
      %v333 = vmul.f32 %v271, %v311
      %v334 = vmul.f32 %v272, %v311
      %v335 = vmul.f32 %v273, %v311
      %v336 = vmul.f32 %v274, %v311
      %v337 = vmul.f32 %v275, %v311
      %v338 = vmul.f32 %v276, %v311
      %v339 = vmul.f32 %v277, %v311
      %v340 = vmul.f32 %v278, %v311
      %v341 = vmul.f32 %v279, %v311
      %v342 = vmul.f32 %v280, %v311
      %v343 = vmul.f32 %v281, %v311
      %v344 = vmul.f32 %v282, %v311
      %v345 = vmul.f32 %v283, %v311
      %v346 = vmul.f32 %v284, %v311
      %v347 = vmul.f32 %v285, %v311
      %v348 = vmul.f32 %v286, %v311
      %v349 = vmul.f32 %v287, %v311
      %v350 = vmul.f32 %v288, %v311
      %v351 = vmul.f32 %v289, %v311
      %v352 = vmul.f32 %v290, %v311
      %v353 = vmul.f32 %v291, %v311
      %v354 = vmul.f32 %v292, %v311
      %v355 = vmul.f32 %v293, %v311
      %v356 = vmul.f32 %v294, %v311
      %v357 = vmul.f32 %v295, %v311
      %v358 = vmul.f32 %v296, %v311
      %v359 = vmul.f32 %v297, %v311
      %v360 = vmul.f32 %v298, %v311
      %v361 = vmul.f32 %v299, %v311
      %v362 = vmul.f32 %v300, %v311
      %v363 = vmul.f32 %v301, %v311
      %v364 = vmul.f32 %v302, %v311
      %v365 = vmul.f32 %v303, %v311
      %v366 = vmul.f32 %v304, %v311
      %v368 = vlaneseq
      %v369 = vshrl.u32 %v368, 7
      %v370 = vsub.s32 0, %v369
      %v371 = vrot.slane %v306, %v370
      %v373 = vadd.f32 %v313, %v371
      %v374 = vadd.f32 %v314, %v371
      %v375 = vadd.f32 %v315, %v371
      %v376 = vadd.f32 %v316, %v371
      %v377 = vadd.f32 %v317, %v371
      %v378 = vadd.f32 %v318, %v371
      %v379 = vadd.f32 %v319, %v371
      %v380 = vadd.f32 %v320, %v371
      %v381 = vadd.f32 %v321, %v371
      %v382 = vadd.f32 %v322, %v371
      %v383 = vadd.f32 %v323, %v371
      %v384 = vadd.f32 %v324, %v371
      %v385 = vadd.f32 %v325, %v371
      %v386 = vadd.f32 %v326, %v371
      %v387 = vadd.f32 %v327, %v371
      %v388 = vadd.f32 %v328, %v371
      %v389 = vadd.f32 %v329, %v371
      %v390 = vadd.f32 %v330, %v371
      %v391 = vadd.f32 %v331, %v371
      %v392 = vadd.f32 %v332, %v371
      %v393 = vadd.f32 %v333, %v371
      %v394 = vadd.f32 %v334, %v371
      %v395 = vadd.f32 %v335, %v371
      %v396 = vadd.f32 %v336, %v371
      %v397 = vadd.f32 %v337, %v371
      %v398 = vadd.f32 %v338, %v371
      %v399 = vadd.f32 %v339, %v371
      %v400 = vadd.f32 %v340, %v371
      %v401 = vadd.f32 %v341, %v371
      %v402 = vadd.f32 %v342, %v371
      %v403 = vadd.f32 %v343, %v371
      %v404 = vadd.f32 %v344, %v371
      %v405 = vadd.f32 %v345, %v371
      %v406 = vadd.f32 %v346, %v371
      %v407 = vadd.f32 %v347, %v371
      %v408 = vadd.f32 %v348, %v371
      %v409 = vadd.f32 %v349, %v371
      %v410 = vadd.f32 %v350, %v371
      %v411 = vadd.f32 %v351, %v371
      %v412 = vadd.f32 %v352, %v371
      %v413 = vadd.f32 %v353, %v371
      %v414 = vadd.f32 %v354, %v371
      %v415 = vadd.f32 %v355, %v371
      %v416 = vadd.f32 %v356, %v371
      %v417 = vadd.f32 %v357, %v371
      %v418 = vadd.f32 %v358, %v371
      %v419 = vadd.f32 %v359, %v371
      %v420 = vadd.f32 %v360, %v371
      %v421 = vadd.f32 %v361, %v371
      %v422 = vadd.f32 %v362, %v371
      %v423 = vadd.f32 %v363, %v371
      %v424 = vadd.f32 %v364, %v371
      %v425 = vadd.f32 %v365, %v371
      %v426 = vadd.f32 %v366, %v371
      %v427 = vmax.f32 %v373, 0.0
      %v428 = vmax.f32 %v374, 0.0
      %v429 = vmax.f32 %v375, 0.0
      %v430 = vmax.f32 %v376, 0.0
      %v431 = vmax.f32 %v377, 0.0
      %v432 = vmax.f32 %v378, 0.0
      %v433 = vmax.f32 %v379, 0.0
      %v434 = vmax.f32 %v380, 0.0
      %v435 = vmax.f32 %v381, 0.0
      %v436 = vmax.f32 %v382, 0.0
      %v437 = vmax.f32 %v383, 0.0
      %v438 = vmax.f32 %v384, 0.0
      %v439 = vmax.f32 %v385, 0.0
      %v440 = vmax.f32 %v386, 0.0
      %v441 = vmax.f32 %v387, 0.0
      %v442 = vmax.f32 %v388, 0.0
      %v443 = vmax.f32 %v389, 0.0
      %v444 = vmax.f32 %v390, 0.0
      %v445 = vmax.f32 %v391, 0.0
      %v446 = vmax.f32 %v392, 0.0
      %v447 = vmax.f32 %v393, 0.0
      %v448 = vmax.f32 %v394, 0.0
      %v449 = vmax.f32 %v395, 0.0
      %v450 = vmax.f32 %v396, 0.0
      %v451 = vmax.f32 %v397, 0.0
      %v452 = vmax.f32 %v398, 0.0
      %v453 = vmax.f32 %v399, 0.0
      %v454 = vmax.f32 %v400, 0.0
      %v455 = vmax.f32 %v401, 0.0
      %v456 = vmax.f32 %v402, 0.0
      %v457 = vmax.f32 %v403, 0.0
      %v458 = vmax.f32 %v404, 0.0
      %v459 = vmax.f32 %v405, 0.0
      %v460 = vmax.f32 %v406, 0.0
      %v461 = vmax.f32 %v407, 0.0
      %v462 = vmax.f32 %v408, 0.0
      %v463 = vmax.f32 %v409, 0.0
      %v464 = vmax.f32 %v410, 0.0
      %v465 = vmax.f32 %v411, 0.0
      %v466 = vmax.f32 %v412, 0.0
      %v467 = vmax.f32 %v413, 0.0
      %v468 = vmax.f32 %v414, 0.0
      %v469 = vmax.f32 %v415, 0.0
      %v470 = vmax.f32 %v416, 0.0
      %v471 = vmax.f32 %v417, 0.0
      %v472 = vmax.f32 %v418, 0.0
      %v473 = vmax.f32 %v419, 0.0
      %v474 = vmax.f32 %v420, 0.0
      %v475 = vmax.f32 %v421, 0.0
      %v476 = vmax.f32 %v422, 0.0
      %v477 = vmax.f32 %v423, 0.0
      %v478 = vmax.f32 %v424, 0.0
      %v479 = vmax.f32 %v425, 0.0
      %v480 = vmax.f32 %v426, 0.0
      %s481 = scalar_lea.vmem %s3, %s248
      %v482 = vld [vmem:[%s481] sm:$0xff]
      %v483 = vld [vmem:[%s481 + $0x8] sm:$0xff]
      %v484 = vld [vmem:[%s481 + $0x10] sm:$0x3]
      %v485 = vlaneseq
      %v486 = vshrl.u32 %v485, 7
      %v487 = vsub.s32 0, %v486
      %v488 = vrot.slane %v482, %v487
      %490 = vbcast.lane.b32.xlu0 %v488, 256
      %v491 = vpop.permute.xlu0 %490
      %s493 = sor.u32 256, 8
      %494 = vbcast.lane.b32.xlu0 %v488, %s493
      %v495 = vpop.permute.xlu0 %494
      %s497 = sor.u32 256, 16
      %498 = vbcast.lane.b32.xlu0 %v488, %s497
      %v499 = vpop.permute.xlu0 %498
      %v500 = vlaneseq
      %v501 = vshrl.u32 %v500, 7
      %v502 = vsub.s32 1, %v501
      %v503 = vrot.slane %v482, %v502
      %505 = vbcast.lane.b32.xlu0 %v503, 256
      %v506 = vpop.permute.xlu0 %505
      %s508 = sor.u32 256, 8
      %509 = vbcast.lane.b32.xlu0 %v503, %s508
      %v510 = vpop.permute.xlu0 %509
      %s512 = sor.u32 256, 16
      %513 = vbcast.lane.b32.xlu0 %v503, %s512
      %v514 = vpop.permute.xlu0 %513
      %v515 = vlaneseq
      %v516 = vshrl.u32 %v515, 7
      %v517 = vsub.s32 2, %v516
      %v518 = vrot.slane %v482, %v517
      %520 = vbcast.lane.b32.xlu0 %v518, 256
      %v521 = vpop.permute.xlu0 %520
      %s523 = sor.u32 256, 8
      %524 = vbcast.lane.b32.xlu0 %v518, %s523
      %v525 = vpop.permute.xlu0 %524
      %s527 = sor.u32 256, 16
      %528 = vbcast.lane.b32.xlu0 %v518, %s527
      %v529 = vpop.permute.xlu0 %528
      %v530 = vlaneseq
      %v531 = vshrl.u32 %v530, 7
      %v532 = vsub.s32 3, %v531
      %v533 = vrot.slane %v482, %v532
      %535 = vbcast.lane.b32.xlu0 %v533, 256
      %v536 = vpop.permute.xlu0 %535
      %s538 = sor.u32 256, 8
      %539 = vbcast.lane.b32.xlu0 %v533, %s538
      %v540 = vpop.permute.xlu0 %539
      %s542 = sor.u32 256, 16
      %543 = vbcast.lane.b32.xlu0 %v533, %s542
      %v544 = vpop.permute.xlu0 %543
      %v545 = vlaneseq
      %v546 = vshrl.u32 %v545, 7
      %v547 = vsub.s32 4, %v546
      %v548 = vrot.slane %v482, %v547
      %550 = vbcast.lane.b32.xlu0 %v548, 256
      %v551 = vpop.permute.xlu0 %550
      %s553 = sor.u32 256, 8
      %554 = vbcast.lane.b32.xlu0 %v548, %s553
      %v555 = vpop.permute.xlu0 %554
      %s557 = sor.u32 256, 16
      %558 = vbcast.lane.b32.xlu0 %v548, %s557
      %v559 = vpop.permute.xlu0 %558
      %v560 = vlaneseq
      %v561 = vshrl.u32 %v560, 7
      %v562 = vsub.s32 5, %v561
      %v563 = vrot.slane %v482, %v562
      %565 = vbcast.lane.b32.xlu0 %v563, 256
      %v566 = vpop.permute.xlu0 %565
      %s568 = sor.u32 256, 8
      %569 = vbcast.lane.b32.xlu0 %v563, %s568
      %v570 = vpop.permute.xlu0 %569
      %s572 = sor.u32 256, 16
      %573 = vbcast.lane.b32.xlu0 %v563, %s572
      %v574 = vpop.permute.xlu0 %573
      %v575 = vlaneseq
      %v576 = vshrl.u32 %v575, 7
      %v577 = vsub.s32 6, %v576
      %v578 = vrot.slane %v482, %v577
      %580 = vbcast.lane.b32.xlu0 %v578, 256
      %v581 = vpop.permute.xlu0 %580
      %s583 = sor.u32 256, 8
      %584 = vbcast.lane.b32.xlu0 %v578, %s583
      %v585 = vpop.permute.xlu0 %584
      %s587 = sor.u32 256, 16
      %588 = vbcast.lane.b32.xlu0 %v578, %s587
      %v589 = vpop.permute.xlu0 %588
      %v590 = vlaneseq
      %v591 = vshrl.u32 %v590, 7
      %v592 = vsub.s32 7, %v591
      %v593 = vrot.slane %v482, %v592
      %595 = vbcast.lane.b32.xlu0 %v593, 256
      %v596 = vpop.permute.xlu0 %595
      %s598 = sor.u32 256, 8
      %599 = vbcast.lane.b32.xlu0 %v593, %s598
      %v600 = vpop.permute.xlu0 %599
      %s602 = sor.u32 256, 16
      %603 = vbcast.lane.b32.xlu0 %v593, %s602
      %v604 = vpop.permute.xlu0 %603
      %v605 = vlaneseq
      %v606 = vshrl.u32 %v605, 7
      %v607 = vsub.s32 0, %v606
      %v608 = vrot.slane %v483, %v607
      %610 = vbcast.lane.b32.xlu0 %v608, 256
      %v611 = vpop.permute.xlu0 %610
      %s613 = sor.u32 256, 8
      %614 = vbcast.lane.b32.xlu0 %v608, %s613
      %v615 = vpop.permute.xlu0 %614
      %s617 = sor.u32 256, 16
      %618 = vbcast.lane.b32.xlu0 %v608, %s617
      %v619 = vpop.permute.xlu0 %618
      %v620 = vlaneseq
      %v621 = vshrl.u32 %v620, 7
      %v622 = vsub.s32 1, %v621
      %v623 = vrot.slane %v483, %v622
      %625 = vbcast.lane.b32.xlu0 %v623, 256
      %v626 = vpop.permute.xlu0 %625
      %s628 = sor.u32 256, 8
      %629 = vbcast.lane.b32.xlu0 %v623, %s628
      %v630 = vpop.permute.xlu0 %629
      %s632 = sor.u32 256, 16
      %633 = vbcast.lane.b32.xlu0 %v623, %s632
      %v634 = vpop.permute.xlu0 %633
      %v635 = vlaneseq
      %v636 = vshrl.u32 %v635, 7
      %v637 = vsub.s32 2, %v636
      %v638 = vrot.slane %v483, %v637
      %640 = vbcast.lane.b32.xlu0 %v638, 256
      %v641 = vpop.permute.xlu0 %640
      %s643 = sor.u32 256, 8
      %644 = vbcast.lane.b32.xlu0 %v638, %s643
      %v645 = vpop.permute.xlu0 %644
      %s647 = sor.u32 256, 16
      %648 = vbcast.lane.b32.xlu0 %v638, %s647
      %v649 = vpop.permute.xlu0 %648
      %v650 = vlaneseq
      %v651 = vshrl.u32 %v650, 7
      %v652 = vsub.s32 3, %v651
      %v653 = vrot.slane %v483, %v652
      %655 = vbcast.lane.b32.xlu0 %v653, 256
      %v656 = vpop.permute.xlu0 %655
      %s658 = sor.u32 256, 8
      %659 = vbcast.lane.b32.xlu0 %v653, %s658
      %v660 = vpop.permute.xlu0 %659
      %s662 = sor.u32 256, 16
      %663 = vbcast.lane.b32.xlu0 %v653, %s662
      %v664 = vpop.permute.xlu0 %663
      %v665 = vlaneseq
      %v666 = vshrl.u32 %v665, 7
      %v667 = vsub.s32 4, %v666
      %v668 = vrot.slane %v483, %v667
      %670 = vbcast.lane.b32.xlu0 %v668, 256
      %v671 = vpop.permute.xlu0 %670
      %s673 = sor.u32 256, 8
      %674 = vbcast.lane.b32.xlu0 %v668, %s673
      %v675 = vpop.permute.xlu0 %674
      %s677 = sor.u32 256, 16
      %678 = vbcast.lane.b32.xlu0 %v668, %s677
      %v679 = vpop.permute.xlu0 %678
      %v680 = vlaneseq
      %v681 = vshrl.u32 %v680, 7
      %v682 = vsub.s32 5, %v681
      %v683 = vrot.slane %v483, %v682
      %685 = vbcast.lane.b32.xlu0 %v683, 256
      %v686 = vpop.permute.xlu0 %685
      %s688 = sor.u32 256, 8
      %689 = vbcast.lane.b32.xlu0 %v683, %s688
      %v690 = vpop.permute.xlu0 %689
      %s692 = sor.u32 256, 16
      %693 = vbcast.lane.b32.xlu0 %v683, %s692
      %v694 = vpop.permute.xlu0 %693
      %v695 = vlaneseq
      %v696 = vshrl.u32 %v695, 7
      %v697 = vsub.s32 6, %v696
      %v698 = vrot.slane %v483, %v697
      %700 = vbcast.lane.b32.xlu0 %v698, 256
      %v701 = vpop.permute.xlu0 %700
      %s703 = sor.u32 256, 8
      %704 = vbcast.lane.b32.xlu0 %v698, %s703
      %v705 = vpop.permute.xlu0 %704
      %s707 = sor.u32 256, 16
      %708 = vbcast.lane.b32.xlu0 %v698, %s707
      %v709 = vpop.permute.xlu0 %708
      %v710 = vlaneseq
      %v711 = vshrl.u32 %v710, 7
      %v712 = vsub.s32 7, %v711
      %v713 = vrot.slane %v483, %v712
      %715 = vbcast.lane.b32.xlu0 %v713, 256
      %v716 = vpop.permute.xlu0 %715
      %s718 = sor.u32 256, 8
      %719 = vbcast.lane.b32.xlu0 %v713, %s718
      %v720 = vpop.permute.xlu0 %719
      %s722 = sor.u32 256, 16
      %723 = vbcast.lane.b32.xlu0 %v713, %s722
      %v724 = vpop.permute.xlu0 %723
      %v725 = vlaneseq
      %v726 = vshrl.u32 %v725, 7
      %v727 = vsub.s32 0, %v726
      %v728 = vrot.slane %v484, %v727
      %730 = vbcast.lane.b32.xlu0 %v728, 256
      %v731 = vpop.permute.xlu0 %730
      %s733 = sor.u32 256, 8
      %734 = vbcast.lane.b32.xlu0 %v728, %s733
      %v735 = vpop.permute.xlu0 %734
      %s737 = sor.u32 256, 16
      %738 = vbcast.lane.b32.xlu0 %v728, %s737
      %v739 = vpop.permute.xlu0 %738
      %v740 = vlaneseq
      %v741 = vshrl.u32 %v740, 7
      %v742 = vsub.s32 1, %v741
      %v743 = vrot.slane %v484, %v742
      %745 = vbcast.lane.b32.xlu0 %v743, 256
      %v746 = vpop.permute.xlu0 %745
      %s748 = sor.u32 256, 8
      %749 = vbcast.lane.b32.xlu0 %v743, %s748
      %v750 = vpop.permute.xlu0 %749
      %s752 = sor.u32 256, 16
      %753 = vbcast.lane.b32.xlu0 %v743, %s752
      %v754 = vpop.permute.xlu0 %753
      %v755 = vmul.f32 %v427, %v491
      %v756 = vmul.f32 %v428, %v495
      %v757 = vmul.f32 %v429, %v499
      %v758 = vmul.f32 %v430, %v506
      %v759 = vmul.f32 %v431, %v510
      %v760 = vmul.f32 %v432, %v514
      %v761 = vmul.f32 %v433, %v521
      %v762 = vmul.f32 %v434, %v525
      %v763 = vmul.f32 %v435, %v529
      %v764 = vmul.f32 %v436, %v536
      %v765 = vmul.f32 %v437, %v540
      %v766 = vmul.f32 %v438, %v544
      %v767 = vmul.f32 %v439, %v551
      %v768 = vmul.f32 %v440, %v555
      %v769 = vmul.f32 %v441, %v559
      %v770 = vmul.f32 %v442, %v566
      %v771 = vmul.f32 %v443, %v570
      %v772 = vmul.f32 %v444, %v574
      %v773 = vmul.f32 %v445, %v581
      %v774 = vmul.f32 %v446, %v585
      %v775 = vmul.f32 %v447, %v589
      %v776 = vmul.f32 %v448, %v596
      %v777 = vmul.f32 %v449, %v600
      %v778 = vmul.f32 %v450, %v604
      %v779 = vmul.f32 %v451, %v611
      %v780 = vmul.f32 %v452, %v615
      %v781 = vmul.f32 %v453, %v619
      %v782 = vmul.f32 %v454, %v626
      %v783 = vmul.f32 %v455, %v630
      %v784 = vmul.f32 %v456, %v634
      %v785 = vmul.f32 %v457, %v641
      %v786 = vmul.f32 %v458, %v645
      %v787 = vmul.f32 %v459, %v649
      %v788 = vmul.f32 %v460, %v656
      %v789 = vmul.f32 %v461, %v660
      %v790 = vmul.f32 %v462, %v664
      %v791 = vmul.f32 %v463, %v671
      %v792 = vmul.f32 %v464, %v675
      %v793 = vmul.f32 %v465, %v679
      %v794 = vmul.f32 %v466, %v686
      %v795 = vmul.f32 %v467, %v690
      %v796 = vmul.f32 %v468, %v694
      %v797 = vmul.f32 %v469, %v701
      %v798 = vmul.f32 %v470, %v705
      %v799 = vmul.f32 %v471, %v709
      %v800 = vmul.f32 %v472, %v716
      %v801 = vmul.f32 %v473, %v720
      %v802 = vmul.f32 %v474, %v724
      %v803 = vmul.f32 %v475, %v731
      %v804 = vmul.f32 %v476, %v735
      %v805 = vmul.f32 %v477, %v739
      %v806 = vmul.f32 %v478, %v746
      %v807 = vmul.f32 %v479, %v750
      %v808 = vmul.f32 %v480, %v754
      %vm809 = vcmask 64512
      %810 = vst.msk [vmem:[#allocation2] sm:$0xff] %vm809, %v755
      %811 = vst.msk [vmem:[#allocation2 + $0x8] sm:$0xff] %vm809, %v756
      %812 = vst.msk [vmem:[#allocation2 + $0x10] sm:$0xff] %vm809, %v758
      %813 = vst.msk [vmem:[#allocation2 + $0x18] sm:$0xff] %vm809, %v759
      %814 = vst.msk [vmem:[#allocation2 + $0x20] sm:$0xff] %vm809, %v761
      %815 = vst.msk [vmem:[#allocation2 + $0x28] sm:$0xff] %vm809, %v762
      %816 = vst.msk [vmem:[#allocation2 + $0x30] sm:$0xff] %vm809, %v764
      %817 = vst.msk [vmem:[#allocation2 + $0x38] sm:$0xff] %vm809, %v765
      %818 = vst.msk [vmem:[#allocation2 + $0x40] sm:$0xff] %vm809, %v767
      %819 = vst.msk [vmem:[#allocation2 + $0x48] sm:$0xff] %vm809, %v768
      %820 = vst.msk [vmem:[#allocation2 + $0x50] sm:$0xff] %vm809, %v770
      %821 = vst.msk [vmem:[#allocation2 + $0x58] sm:$0xff] %vm809, %v771
      %822 = vst.msk [vmem:[#allocation2 + $0x60] sm:$0xff] %vm809, %v773
      %823 = vst.msk [vmem:[#allocation2 + $0x68] sm:$0xff] %vm809, %v774
      %824 = vst.msk [vmem:[#allocation2 + $0x70] sm:$0xff] %vm809, %v776
      %825 = vst.msk [vmem:[#allocation2 + $0x78] sm:$0xff] %vm809, %v777
      %826 = vst.msk [vmem:[#allocation2 + $0x80] sm:$0xff] %vm809, %v779
      %827 = vst.msk [vmem:[#allocation2 + $0x88] sm:$0xff] %vm809, %v780
      %828 = vst.msk [vmem:[#allocation2 + $0x90] sm:$0xff] %vm809, %v782
      %829 = vst.msk [vmem:[#allocation2 + $0x98] sm:$0xff] %vm809, %v783
      %830 = vst.msk [vmem:[#allocation2 + $0xa0] sm:$0xff] %vm809, %v785
      %831 = vst.msk [vmem:[#allocation2 + $0xa8] sm:$0xff] %vm809, %v786
      %832 = vst.msk [vmem:[#allocation2 + $0xb0] sm:$0xff] %vm809, %v788
      %833 = vst.msk [vmem:[#allocation2 + $0xb8] sm:$0xff] %vm809, %v789
      %834 = vst.msk [vmem:[#allocation2 + $0xc0] sm:$0xff] %vm809, %v791
      %835 = vst.msk [vmem:[#allocation2 + $0xc8] sm:$0xff] %vm809, %v792
      %836 = vst.msk [vmem:[#allocation2 + $0xd0] sm:$0xff] %vm809, %v794
      %837 = vst.msk [vmem:[#allocation2 + $0xd8] sm:$0xff] %vm809, %v795
      %838 = vst.msk [vmem:[#allocation2 + $0xe0] sm:$0xff] %vm809, %v797
      %839 = vst.msk [vmem:[#allocation2 + $0xe8] sm:$0xff] %vm809, %v798
      %840 = vst.msk [vmem:[#allocation2 + $0xf0] sm:$0xff] %vm809, %v800
      %841 = vst.msk [vmem:[#allocation2 + $0xf8] sm:$0xff] %vm809, %v801
      %890 = vrot.lane.b32.xlu0 %v755, 8
      %v891 = vpop.permute.xlu0 %890
      %892 = vrot.lane.b32.xlu0 %v756, 8
      %v893 = vpop.permute.xlu0 %892
      %894 = vrot.lane.b32.xlu0 %v757, 8
      %v895 = vpop.permute.xlu0 %894
      %896 = vrot.lane.b32.xlu0 %v758, 8
      %v897 = vpop.permute.xlu0 %896
      %898 = vrot.lane.b32.xlu0 %v759, 8
      %v899 = vpop.permute.xlu0 %898
      %900 = vrot.lane.b32.xlu0 %v760, 8
      %v901 = vpop.permute.xlu0 %900
      %902 = vrot.lane.b32.xlu0 %v761, 8
      %v903 = vpop.permute.xlu0 %902
      %904 = vrot.lane.b32.xlu0 %v762, 8
      %v905 = vpop.permute.xlu0 %904
      %906 = vrot.lane.b32.xlu0 %v763, 8
      %v907 = vpop.permute.xlu0 %906
      %908 = vrot.lane.b32.xlu0 %v764, 8
      %v909 = vpop.permute.xlu0 %908
      %910 = vrot.lane.b32.xlu0 %v765, 8
      %v911 = vpop.permute.xlu0 %910
      %912 = vrot.lane.b32.xlu0 %v766, 8
      %v913 = vpop.permute.xlu0 %912
      %914 = vrot.lane.b32.xlu0 %v767, 8
      %v915 = vpop.permute.xlu0 %914
      %916 = vrot.lane.b32.xlu0 %v768, 8
      %v917 = vpop.permute.xlu0 %916
      %918 = vrot.lane.b32.xlu0 %v769, 8
      %v919 = vpop.permute.xlu0 %918
      %920 = vrot.lane.b32.xlu0 %v770, 8
      %v921 = vpop.permute.xlu0 %920
      %922 = vrot.lane.b32.xlu0 %v771, 8
      %v923 = vpop.permute.xlu0 %922
      %924 = vrot.lane.b32.xlu0 %v772, 8
      %v925 = vpop.permute.xlu0 %924
      %926 = vrot.lane.b32.xlu0 %v773, 8
      %v927 = vpop.permute.xlu0 %926
      %928 = vrot.lane.b32.xlu0 %v774, 8
      %v929 = vpop.permute.xlu0 %928
      %930 = vrot.lane.b32.xlu0 %v775, 8
      %v931 = vpop.permute.xlu0 %930
      %932 = vrot.lane.b32.xlu0 %v776, 8
      %v933 = vpop.permute.xlu0 %932
      %934 = vrot.lane.b32.xlu0 %v777, 8
      %v935 = vpop.permute.xlu0 %934
      %936 = vrot.lane.b32.xlu0 %v778, 8
      %v937 = vpop.permute.xlu0 %936
      %938 = vrot.lane.b32.xlu0 %v779, 8
      %v939 = vpop.permute.xlu0 %938
      %940 = vrot.lane.b32.xlu0 %v780, 8
      %v941 = vpop.permute.xlu0 %940
      %942 = vrot.lane.b32.xlu0 %v781, 8
      %v943 = vpop.permute.xlu0 %942
      %944 = vrot.lane.b32.xlu0 %v782, 8
      %v945 = vpop.permute.xlu0 %944
      %946 = vrot.lane.b32.xlu0 %v783, 8
      %v947 = vpop.permute.xlu0 %946
      %948 = vrot.lane.b32.xlu0 %v784, 8
      %v949 = vpop.permute.xlu0 %948
      %950 = vrot.lane.b32.xlu0 %v785, 8
      %v951 = vpop.permute.xlu0 %950
      %952 = vrot.lane.b32.xlu0 %v786, 8
      %v953 = vpop.permute.xlu0 %952
      %954 = vrot.lane.b32.xlu0 %v787, 8
      %v955 = vpop.permute.xlu0 %954
      %956 = vrot.lane.b32.xlu0 %v788, 8
      %v957 = vpop.permute.xlu0 %956
      %958 = vrot.lane.b32.xlu0 %v789, 8
      %v959 = vpop.permute.xlu0 %958
      %960 = vrot.lane.b32.xlu0 %v790, 8
      %v961 = vpop.permute.xlu0 %960
      %962 = vrot.lane.b32.xlu0 %v791, 8
      %v963 = vpop.permute.xlu0 %962
      %964 = vrot.lane.b32.xlu0 %v792, 8
      %v965 = vpop.permute.xlu0 %964
      %966 = vrot.lane.b32.xlu0 %v793, 8
      %v967 = vpop.permute.xlu0 %966
      %968 = vrot.lane.b32.xlu0 %v794, 8
      %v969 = vpop.permute.xlu0 %968
      %970 = vrot.lane.b32.xlu0 %v795, 8
      %v971 = vpop.permute.xlu0 %970
      %972 = vrot.lane.b32.xlu0 %v796, 8
      %v973 = vpop.permute.xlu0 %972
      %974 = vrot.lane.b32.xlu0 %v797, 8
      %v975 = vpop.permute.xlu0 %974
      %976 = vrot.lane.b32.xlu0 %v798, 8
      %v977 = vpop.permute.xlu0 %976
      %978 = vrot.lane.b32.xlu0 %v799, 8
      %v979 = vpop.permute.xlu0 %978
      %980 = vrot.lane.b32.xlu0 %v800, 8
      %v981 = vpop.permute.xlu0 %980
      %982 = vrot.lane.b32.xlu0 %v801, 8
      %v983 = vpop.permute.xlu0 %982
      %984 = vrot.lane.b32.xlu0 %v802, 8
      %v985 = vpop.permute.xlu0 %984
      %vm1034 = vcmask 130113
      %1035 = vst.msk [vmem:[#allocation2 - $0x1] sm:$0xfe] %vm1034, %v891
      %vm1036 = vcmask 130112
      %1037 = vst.msk [vmem:[#allocation2 + $0x7] sm:$0xff] %vm1036, %v893
      %vm1038 = vcmask 122944
      %1039 = vst.msk [vmem:[#allocation2 + $0xf] sm:$0x1] %vm1038, %v895
      %1040 = vst.msk [vmem:[#allocation2 + $0xf] sm:$0xfe] %vm1034, %v897
      %1041 = vst.msk [vmem:[#allocation2 + $0x17] sm:$0xff] %vm1036, %v899
      %1042 = vst.msk [vmem:[#allocation2 + $0x1f] sm:$0x1] %vm1038, %v901
      %1043 = vst.msk [vmem:[#allocation2 + $0x1f] sm:$0xfe] %vm1034, %v903
      %1044 = vst.msk [vmem:[#allocation2 + $0x27] sm:$0xff] %vm1036, %v905
      %1045 = vst.msk [vmem:[#allocation2 + $0x2f] sm:$0x1] %vm1038, %v907
      %1046 = vst.msk [vmem:[#allocation2 + $0x2f] sm:$0xfe] %vm1034, %v909
      %1047 = vst.msk [vmem:[#allocation2 + $0x37] sm:$0xff] %vm1036, %v911
      %1048 = vst.msk [vmem:[#allocation2 + $0x3f] sm:$0x1] %vm1038, %v913
      %1049 = vst.msk [vmem:[#allocation2 + $0x3f] sm:$0xfe] %vm1034, %v915
      %1050 = vst.msk [vmem:[#allocation2 + $0x47] sm:$0xff] %vm1036, %v917
      %1051 = vst.msk [vmem:[#allocation2 + $0x4f] sm:$0x1] %vm1038, %v919
      %1052 = vst.msk [vmem:[#allocation2 + $0x4f] sm:$0xfe] %vm1034, %v921
      %1053 = vst.msk [vmem:[#allocation2 + $0x57] sm:$0xff] %vm1036, %v923
      %1054 = vst.msk [vmem:[#allocation2 + $0x5f] sm:$0x1] %vm1038, %v925
      %1055 = vst.msk [vmem:[#allocation2 + $0x5f] sm:$0xfe] %vm1034, %v927
      %1056 = vst.msk [vmem:[#allocation2 + $0x67] sm:$0xff] %vm1036, %v929
      %1057 = vst.msk [vmem:[#allocation2 + $0x6f] sm:$0x1] %vm1038, %v931
      %1058 = vst.msk [vmem:[#allocation2 + $0x6f] sm:$0xfe] %vm1034, %v933
      %1059 = vst.msk [vmem:[#allocation2 + $0x77] sm:$0xff] %vm1036, %v935
      %1060 = vst.msk [vmem:[#allocation2 + $0x7f] sm:$0x1] %vm1038, %v937
      %1061 = vst.msk [vmem:[#allocation2 + $0x7f] sm:$0xfe] %vm1034, %v939
      %1062 = vst.msk [vmem:[#allocation2 + $0x87] sm:$0xff] %vm1036, %v941
      %1063 = vst.msk [vmem:[#allocation2 + $0x8f] sm:$0x1] %vm1038, %v943
      %1064 = vst.msk [vmem:[#allocation2 + $0x8f] sm:$0xfe] %vm1034, %v945
      %1065 = vst.msk [vmem:[#allocation2 + $0x97] sm:$0xff] %vm1036, %v947
      %1066 = vst.msk [vmem:[#allocation2 + $0x9f] sm:$0x1] %vm1038, %v949
      %1067 = vst.msk [vmem:[#allocation2 + $0x9f] sm:$0xfe] %vm1034, %v951
      %1068 = vst.msk [vmem:[#allocation2 + $0xa7] sm:$0xff] %vm1036, %v953
      %1069 = vst.msk [vmem:[#allocation2 + $0xaf] sm:$0x1] %vm1038, %v955
      %1070 = vst.msk [vmem:[#allocation2 + $0xaf] sm:$0xfe] %vm1034, %v957
      %1071 = vst.msk [vmem:[#allocation2 + $0xb7] sm:$0xff] %vm1036, %v959
      %1072 = vst.msk [vmem:[#allocation2 + $0xbf] sm:$0x1] %vm1038, %v961
      %1073 = vst.msk [vmem:[#allocation2 + $0xbf] sm:$0xfe] %vm1034, %v963
      %1074 = vst.msk [vmem:[#allocation2 + $0xc7] sm:$0xff] %vm1036, %v965
      %1075 = vst.msk [vmem:[#allocation2 + $0xcf] sm:$0x1] %vm1038, %v967
      %1076 = vst.msk [vmem:[#allocation2 + $0xcf] sm:$0xfe] %vm1034, %v969
      %1077 = vst.msk [vmem:[#allocation2 + $0xd7] sm:$0xff] %vm1036, %v971
      %1078 = vst.msk [vmem:[#allocation2 + $0xdf] sm:$0x1] %vm1038, %v973
      %1079 = vst.msk [vmem:[#allocation2 + $0xdf] sm:$0xfe] %vm1034, %v975
      %1080 = vst.msk [vmem:[#allocation2 + $0xe7] sm:$0xff] %vm1036, %v977
      %1081 = vst.msk [vmem:[#allocation2 + $0xef] sm:$0x1] %vm1038, %v979
      %1082 = vst.msk [vmem:[#allocation2 + $0xef] sm:$0xfe] %vm1034, %v981
      %1083 = vst.msk [vmem:[#allocation2 + $0xf7] sm:$0xff] %vm1036, %v983
      %1084 = vst.msk [vmem:[#allocation2 + $0xff] sm:$0x1] %vm1038, %v985
      %1085 = vrot.lane.b32.xlu0 %v755, 16
      %v1086 = vpop.permute.xlu0 %1085
      %1087 = vrot.lane.b32.xlu0 %v756, 16
      %v1088 = vpop.permute.xlu0 %1087
      %1089 = vrot.lane.b32.xlu0 %v757, 16
      %v1090 = vpop.permute.xlu0 %1089
      %1091 = vrot.lane.b32.xlu0 %v758, 16
      %v1092 = vpop.permute.xlu0 %1091
      %1093 = vrot.lane.b32.xlu0 %v759, 16
      %v1094 = vpop.permute.xlu0 %1093
      %1095 = vrot.lane.b32.xlu0 %v760, 16
      %v1096 = vpop.permute.xlu0 %1095
      %1097 = vrot.lane.b32.xlu0 %v761, 16
      %v1098 = vpop.permute.xlu0 %1097
      %1099 = vrot.lane.b32.xlu0 %v762, 16
      %v1100 = vpop.permute.xlu0 %1099
      %1101 = vrot.lane.b32.xlu0 %v763, 16
      %v1102 = vpop.permute.xlu0 %1101
      %1103 = vrot.lane.b32.xlu0 %v764, 16
      %v1104 = vpop.permute.xlu0 %1103
      %1105 = vrot.lane.b32.xlu0 %v765, 16
      %v1106 = vpop.permute.xlu0 %1105
      %1107 = vrot.lane.b32.xlu0 %v766, 16
      %v1108 = vpop.permute.xlu0 %1107
      %1109 = vrot.lane.b32.xlu0 %v767, 16
      %v1110 = vpop.permute.xlu0 %1109
      %1111 = vrot.lane.b32.xlu0 %v768, 16
      %v1112 = vpop.permute.xlu0 %1111
      %1113 = vrot.lane.b32.xlu0 %v769, 16
      %v1114 = vpop.permute.xlu0 %1113
      %1115 = vrot.lane.b32.xlu0 %v770, 16
      %v1116 = vpop.permute.xlu0 %1115
      %1117 = vrot.lane.b32.xlu0 %v771, 16
      %v1118 = vpop.permute.xlu0 %1117
      %1119 = vrot.lane.b32.xlu0 %v772, 16
      %v1120 = vpop.permute.xlu0 %1119
      %1121 = vrot.lane.b32.xlu0 %v773, 16
      %v1122 = vpop.permute.xlu0 %1121
      %1123 = vrot.lane.b32.xlu0 %v774, 16
      %v1124 = vpop.permute.xlu0 %1123
      %1125 = vrot.lane.b32.xlu0 %v775, 16
      %v1126 = vpop.permute.xlu0 %1125
      %1127 = vrot.lane.b32.xlu0 %v776, 16
      %v1128 = vpop.permute.xlu0 %1127
      %1129 = vrot.lane.b32.xlu0 %v777, 16
      %v1130 = vpop.permute.xlu0 %1129
      %1131 = vrot.lane.b32.xlu0 %v778, 16
      %v1132 = vpop.permute.xlu0 %1131
      %1133 = vrot.lane.b32.xlu0 %v779, 16
      %v1134 = vpop.permute.xlu0 %1133
      %1135 = vrot.lane.b32.xlu0 %v780, 16
      %v1136 = vpop.permute.xlu0 %1135
      %1137 = vrot.lane.b32.xlu0 %v781, 16
      %v1138 = vpop.permute.xlu0 %1137
      %1139 = vrot.lane.b32.xlu0 %v782, 16
      %v1140 = vpop.permute.xlu0 %1139
      %1141 = vrot.lane.b32.xlu0 %v783, 16
      %v1142 = vpop.permute.xlu0 %1141
      %1143 = vrot.lane.b32.xlu0 %v784, 16
      %v1144 = vpop.permute.xlu0 %1143
      %1145 = vrot.lane.b32.xlu0 %v785, 16
      %v1146 = vpop.permute.xlu0 %1145
      %1147 = vrot.lane.b32.xlu0 %v786, 16
      %v1148 = vpop.permute.xlu0 %1147
      %1149 = vrot.lane.b32.xlu0 %v787, 16
      %v1150 = vpop.permute.xlu0 %1149
      %1151 = vrot.lane.b32.xlu0 %v788, 16
      %v1152 = vpop.permute.xlu0 %1151
      %1153 = vrot.lane.b32.xlu0 %v789, 16
      %v1154 = vpop.permute.xlu0 %1153
      %1155 = vrot.lane.b32.xlu0 %v790, 16
      %v1156 = vpop.permute.xlu0 %1155
      %1157 = vrot.lane.b32.xlu0 %v791, 16
      %v1158 = vpop.permute.xlu0 %1157
      %1159 = vrot.lane.b32.xlu0 %v792, 16
      %v1160 = vpop.permute.xlu0 %1159
      %1161 = vrot.lane.b32.xlu0 %v793, 16
      %v1162 = vpop.permute.xlu0 %1161
      %1163 = vrot.lane.b32.xlu0 %v794, 16
      %v1164 = vpop.permute.xlu0 %1163
      %1165 = vrot.lane.b32.xlu0 %v795, 16
      %v1166 = vpop.permute.xlu0 %1165
      %1167 = vrot.lane.b32.xlu0 %v796, 16
      %v1168 = vpop.permute.xlu0 %1167
      %1169 = vrot.lane.b32.xlu0 %v797, 16
      %v1170 = vpop.permute.xlu0 %1169
      %1171 = vrot.lane.b32.xlu0 %v798, 16
      %v1172 = vpop.permute.xlu0 %1171
      %1173 = vrot.lane.b32.xlu0 %v799, 16
      %v1174 = vpop.permute.xlu0 %1173
      %1175 = vrot.lane.b32.xlu0 %v800, 16
      %v1176 = vpop.permute.xlu0 %1175
      %1177 = vrot.lane.b32.xlu0 %v801, 16
      %v1178 = vpop.permute.xlu0 %1177
      %1179 = vrot.lane.b32.xlu0 %v802, 16
      %v1180 = vpop.permute.xlu0 %1179
      %vm1229 = vcmask 195714
      %1230 = vst.msk [vmem:[#allocation2 - $0x2] sm:$0xfc] %vm1229, %v1086
      %vm1231 = vcmask 195712
      %1232 = vst.msk [vmem:[#allocation2 + $0x6] sm:$0xff] %vm1231, %v1088
      %vm1233 = vcmask 189568
      %1234 = vst.msk [vmem:[#allocation2 + $0xe] sm:$0x3] %vm1233, %v1090
      %1235 = vst.msk [vmem:[#allocation2 + $0xe] sm:$0xfc] %vm1229, %v1092
      %1236 = vst.msk [vmem:[#allocation2 + $0x16] sm:$0xff] %vm1231, %v1094
      %1237 = vst.msk [vmem:[#allocation2 + $0x1e] sm:$0x3] %vm1233, %v1096
      %1238 = vst.msk [vmem:[#allocation2 + $0x1e] sm:$0xfc] %vm1229, %v1098
      %1239 = vst.msk [vmem:[#allocation2 + $0x26] sm:$0xff] %vm1231, %v1100
      %1240 = vst.msk [vmem:[#allocation2 + $0x2e] sm:$0x3] %vm1233, %v1102
      %1241 = vst.msk [vmem:[#allocation2 + $0x2e] sm:$0xfc] %vm1229, %v1104
      %1242 = vst.msk [vmem:[#allocation2 + $0x36] sm:$0xff] %vm1231, %v1106
      %1243 = vst.msk [vmem:[#allocation2 + $0x3e] sm:$0x3] %vm1233, %v1108
      %1244 = vst.msk [vmem:[#allocation2 + $0x3e] sm:$0xfc] %vm1229, %v1110
      %1245 = vst.msk [vmem:[#allocation2 + $0x46] sm:$0xff] %vm1231, %v1112
      %1246 = vst.msk [vmem:[#allocation2 + $0x4e] sm:$0x3] %vm1233, %v1114
      %1247 = vst.msk [vmem:[#allocation2 + $0x4e] sm:$0xfc] %vm1229, %v1116
      %1248 = vst.msk [vmem:[#allocation2 + $0x56] sm:$0xff] %vm1231, %v1118
      %1249 = vst.msk [vmem:[#allocation2 + $0x5e] sm:$0x3] %vm1233, %v1120
      %1250 = vst.msk [vmem:[#allocation2 + $0x5e] sm:$0xfc] %vm1229, %v1122
      %1251 = vst.msk [vmem:[#allocation2 + $0x66] sm:$0xff] %vm1231, %v1124
      %1252 = vst.msk [vmem:[#allocation2 + $0x6e] sm:$0x3] %vm1233, %v1126
      %1253 = vst.msk [vmem:[#allocation2 + $0x6e] sm:$0xfc] %vm1229, %v1128
      %1254 = vst.msk [vmem:[#allocation2 + $0x76] sm:$0xff] %vm1231, %v1130
      %1255 = vst.msk [vmem:[#allocation2 + $0x7e] sm:$0x3] %vm1233, %v1132
      %1256 = vst.msk [vmem:[#allocation2 + $0x7e] sm:$0xfc] %vm1229, %v1134
      %1257 = vst.msk [vmem:[#allocation2 + $0x86] sm:$0xff] %vm1231, %v1136
      %1258 = vst.msk [vmem:[#allocation2 + $0x8e] sm:$0x3] %vm1233, %v1138
      %1259 = vst.msk [vmem:[#allocation2 + $0x8e] sm:$0xfc] %vm1229, %v1140
      %1260 = vst.msk [vmem:[#allocation2 + $0x96] sm:$0xff] %vm1231, %v1142
      %1261 = vst.msk [vmem:[#allocation2 + $0x9e] sm:$0x3] %vm1233, %v1144
      %1262 = vst.msk [vmem:[#allocation2 + $0x9e] sm:$0xfc] %vm1229, %v1146
      %1263 = vst.msk [vmem:[#allocation2 + $0xa6] sm:$0xff] %vm1231, %v1148
      %1264 = vst.msk [vmem:[#allocation2 + $0xae] sm:$0x3] %vm1233, %v1150
      %1265 = vst.msk [vmem:[#allocation2 + $0xae] sm:$0xfc] %vm1229, %v1152
      %1266 = vst.msk [vmem:[#allocation2 + $0xb6] sm:$0xff] %vm1231, %v1154
      %1267 = vst.msk [vmem:[#allocation2 + $0xbe] sm:$0x3] %vm1233, %v1156
      %1268 = vst.msk [vmem:[#allocation2 + $0xbe] sm:$0xfc] %vm1229, %v1158
      %1269 = vst.msk [vmem:[#allocation2 + $0xc6] sm:$0xff] %vm1231, %v1160
      %1270 = vst.msk [vmem:[#allocation2 + $0xce] sm:$0x3] %vm1233, %v1162
      %1271 = vst.msk [vmem:[#allocation2 + $0xce] sm:$0xfc] %vm1229, %v1164
      %1272 = vst.msk [vmem:[#allocation2 + $0xd6] sm:$0xff] %vm1231, %v1166
      %1273 = vst.msk [vmem:[#allocation2 + $0xde] sm:$0x3] %vm1233, %v1168
      %1274 = vst.msk [vmem:[#allocation2 + $0xde] sm:$0xfc] %vm1229, %v1170
      %1275 = vst.msk [vmem:[#allocation2 + $0xe6] sm:$0xff] %vm1231, %v1172
      %1276 = vst.msk [vmem:[#allocation2 + $0xee] sm:$0x3] %vm1233, %v1174
      %1277 = vst.msk [vmem:[#allocation2 + $0xee] sm:$0xfc] %vm1229, %v1176
      %1278 = vst.msk [vmem:[#allocation2 + $0xf6] sm:$0xff] %vm1231, %v1178
      %1279 = vst.msk [vmem:[#allocation2 + $0xfe] sm:$0x3] %vm1233, %v1180
      %1282 = vrot.lane.b32.xlu0 %v758, 24
      %v1283 = vpop.permute.xlu0 %1282
      %1284 = vrot.lane.b32.xlu0 %v759, 24
      %v1285 = vpop.permute.xlu0 %1284
      %1286 = vrot.lane.b32.xlu0 %v761, 24
      %v1287 = vpop.permute.xlu0 %1286
      %1288 = vrot.lane.b32.xlu0 %v762, 24
      %v1289 = vpop.permute.xlu0 %1288
      %1290 = vrot.lane.b32.xlu0 %v764, 24
      %v1291 = vpop.permute.xlu0 %1290
      %1292 = vrot.lane.b32.xlu0 %v765, 24
      %v1293 = vpop.permute.xlu0 %1292
      %1294 = vrot.lane.b32.xlu0 %v767, 24
      %v1295 = vpop.permute.xlu0 %1294
      %1296 = vrot.lane.b32.xlu0 %v768, 24
      %v1297 = vpop.permute.xlu0 %1296
      %1298 = vrot.lane.b32.xlu0 %v770, 24
      %v1299 = vpop.permute.xlu0 %1298
      %1300 = vrot.lane.b32.xlu0 %v771, 24
      %v1301 = vpop.permute.xlu0 %1300
      %1302 = vrot.lane.b32.xlu0 %v773, 24
      %v1303 = vpop.permute.xlu0 %1302
      %1304 = vrot.lane.b32.xlu0 %v774, 24
      %v1305 = vpop.permute.xlu0 %1304
      %1306 = vrot.lane.b32.xlu0 %v776, 24
      %v1307 = vpop.permute.xlu0 %1306
      %1308 = vrot.lane.b32.xlu0 %v777, 24
      %v1309 = vpop.permute.xlu0 %1308
      %1310 = vrot.lane.b32.xlu0 %v779, 24
      %v1311 = vpop.permute.xlu0 %1310
      %1312 = vrot.lane.b32.xlu0 %v780, 24
      %v1313 = vpop.permute.xlu0 %1312
      %1314 = vrot.lane.b32.xlu0 %v782, 24
      %v1315 = vpop.permute.xlu0 %1314
      %1316 = vrot.lane.b32.xlu0 %v783, 24
      %v1317 = vpop.permute.xlu0 %1316
      %1318 = vrot.lane.b32.xlu0 %v785, 24
      %v1319 = vpop.permute.xlu0 %1318
      %1320 = vrot.lane.b32.xlu0 %v786, 24
      %v1321 = vpop.permute.xlu0 %1320
      %1322 = vrot.lane.b32.xlu0 %v788, 24
      %v1323 = vpop.permute.xlu0 %1322
      %1324 = vrot.lane.b32.xlu0 %v789, 24
      %v1325 = vpop.permute.xlu0 %1324
      %1326 = vrot.lane.b32.xlu0 %v791, 24
      %v1327 = vpop.permute.xlu0 %1326
      %1328 = vrot.lane.b32.xlu0 %v792, 24
      %v1329 = vpop.permute.xlu0 %1328
      %1330 = vrot.lane.b32.xlu0 %v794, 24
      %v1331 = vpop.permute.xlu0 %1330
      %1332 = vrot.lane.b32.xlu0 %v795, 24
      %v1333 = vpop.permute.xlu0 %1332
      %1334 = vrot.lane.b32.xlu0 %v797, 24
      %v1335 = vpop.permute.xlu0 %1334
      %1336 = vrot.lane.b32.xlu0 %v798, 24
      %v1337 = vpop.permute.xlu0 %1336
      %1338 = vrot.lane.b32.xlu0 %v800, 24
      %v1339 = vpop.permute.xlu0 %1338
      %1340 = vrot.lane.b32.xlu0 %v801, 24
      %v1341 = vpop.permute.xlu0 %1340
      %1342 = vrot.lane.b32.xlu0 %v803, 24
      %v1343 = vpop.permute.xlu0 %1342
      %1344 = vrot.lane.b32.xlu0 %v804, 24
      %v1345 = vpop.permute.xlu0 %1344
      %vm1378 = vcmask 261312
      %1379 = vst.msk [vmem:[#allocation2] sm:$0xff] %vm1378, %v1283
      %1380 = vst.msk [vmem:[#allocation2 + $0x8] sm:$0xff] %vm1378, %v1285
      %1381 = vst.msk [vmem:[#allocation2 + $0x10] sm:$0xff] %vm1378, %v1287
      %1382 = vst.msk [vmem:[#allocation2 + $0x18] sm:$0xff] %vm1378, %v1289
      %1383 = vst.msk [vmem:[#allocation2 + $0x20] sm:$0xff] %vm1378, %v1291
      %1384 = vst.msk [vmem:[#allocation2 + $0x28] sm:$0xff] %vm1378, %v1293
      %1385 = vst.msk [vmem:[#allocation2 + $0x30] sm:$0xff] %vm1378, %v1295
      %1386 = vst.msk [vmem:[#allocation2 + $0x38] sm:$0xff] %vm1378, %v1297
      %1387 = vst.msk [vmem:[#allocation2 + $0x40] sm:$0xff] %vm1378, %v1299
      %1388 = vst.msk [vmem:[#allocation2 + $0x48] sm:$0xff] %vm1378, %v1301
      %1389 = vst.msk [vmem:[#allocation2 + $0x50] sm:$0xff] %vm1378, %v1303
      %1390 = vst.msk [vmem:[#allocation2 + $0x58] sm:$0xff] %vm1378, %v1305
      %1391 = vst.msk [vmem:[#allocation2 + $0x60] sm:$0xff] %vm1378, %v1307
      %1392 = vst.msk [vmem:[#allocation2 + $0x68] sm:$0xff] %vm1378, %v1309
      %1393 = vst.msk [vmem:[#allocation2 + $0x70] sm:$0xff] %vm1378, %v1311
      %1394 = vst.msk [vmem:[#allocation2 + $0x78] sm:$0xff] %vm1378, %v1313
      %1395 = vst.msk [vmem:[#allocation2 + $0x80] sm:$0xff] %vm1378, %v1315
      %1396 = vst.msk [vmem:[#allocation2 + $0x88] sm:$0xff] %vm1378, %v1317
      %1397 = vst.msk [vmem:[#allocation2 + $0x90] sm:$0xff] %vm1378, %v1319
      %1398 = vst.msk [vmem:[#allocation2 + $0x98] sm:$0xff] %vm1378, %v1321
      %1399 = vst.msk [vmem:[#allocation2 + $0xa0] sm:$0xff] %vm1378, %v1323
      %1400 = vst.msk [vmem:[#allocation2 + $0xa8] sm:$0xff] %vm1378, %v1325
      %1401 = vst.msk [vmem:[#allocation2 + $0xb0] sm:$0xff] %vm1378, %v1327
      %1402 = vst.msk [vmem:[#allocation2 + $0xb8] sm:$0xff] %vm1378, %v1329
      %1403 = vst.msk [vmem:[#allocation2 + $0xc0] sm:$0xff] %vm1378, %v1331
      %1404 = vst.msk [vmem:[#allocation2 + $0xc8] sm:$0xff] %vm1378, %v1333
      %1405 = vst.msk [vmem:[#allocation2 + $0xd0] sm:$0xff] %vm1378, %v1335
      %1406 = vst.msk [vmem:[#allocation2 + $0xd8] sm:$0xff] %vm1378, %v1337
      %1407 = vst.msk [vmem:[#allocation2 + $0xe0] sm:$0xff] %vm1378, %v1339
      %1408 = vst.msk [vmem:[#allocation2 + $0xe8] sm:$0xff] %vm1378, %v1341
      %1409 = vst.msk [vmem:[#allocation2 + $0xf0] sm:$0xff] %vm1378, %v1343
      %1410 = vst.msk [vmem:[#allocation2 + $0xf8] sm:$0xff] %vm1378, %v1345
      %1412 = vrot.lane.b32.xlu0 %v758, 32
      %v1413 = vpop.permute.xlu0 %1412
      %1414 = vrot.lane.b32.xlu0 %v759, 32
      %v1415 = vpop.permute.xlu0 %1414
      %1416 = vrot.lane.b32.xlu0 %v760, 32
      %v1417 = vpop.permute.xlu0 %1416
      %1418 = vrot.lane.b32.xlu0 %v761, 32
      %v1419 = vpop.permute.xlu0 %1418
      %1420 = vrot.lane.b32.xlu0 %v762, 32
      %v1421 = vpop.permute.xlu0 %1420
      %1422 = vrot.lane.b32.xlu0 %v763, 32
      %v1423 = vpop.permute.xlu0 %1422
      %1424 = vrot.lane.b32.xlu0 %v764, 32
      %v1425 = vpop.permute.xlu0 %1424
      %1426 = vrot.lane.b32.xlu0 %v765, 32
      %v1427 = vpop.permute.xlu0 %1426
      %1428 = vrot.lane.b32.xlu0 %v766, 32
      %v1429 = vpop.permute.xlu0 %1428
      %1430 = vrot.lane.b32.xlu0 %v767, 32
      %v1431 = vpop.permute.xlu0 %1430
      %1432 = vrot.lane.b32.xlu0 %v768, 32
      %v1433 = vpop.permute.xlu0 %1432
      %1434 = vrot.lane.b32.xlu0 %v769, 32
      %v1435 = vpop.permute.xlu0 %1434
      %1436 = vrot.lane.b32.xlu0 %v770, 32
      %v1437 = vpop.permute.xlu0 %1436
      %1438 = vrot.lane.b32.xlu0 %v771, 32
      %v1439 = vpop.permute.xlu0 %1438
      %1440 = vrot.lane.b32.xlu0 %v772, 32
      %v1441 = vpop.permute.xlu0 %1440
      %1442 = vrot.lane.b32.xlu0 %v773, 32
      %v1443 = vpop.permute.xlu0 %1442
      %1444 = vrot.lane.b32.xlu0 %v774, 32
      %v1445 = vpop.permute.xlu0 %1444
      %1446 = vrot.lane.b32.xlu0 %v775, 32
      %v1447 = vpop.permute.xlu0 %1446
      %1448 = vrot.lane.b32.xlu0 %v776, 32
      %v1449 = vpop.permute.xlu0 %1448
      %1450 = vrot.lane.b32.xlu0 %v777, 32
      %v1451 = vpop.permute.xlu0 %1450
      %1452 = vrot.lane.b32.xlu0 %v778, 32
      %v1453 = vpop.permute.xlu0 %1452
      %1454 = vrot.lane.b32.xlu0 %v779, 32
      %v1455 = vpop.permute.xlu0 %1454
      %1456 = vrot.lane.b32.xlu0 %v780, 32
      %v1457 = vpop.permute.xlu0 %1456
      %1458 = vrot.lane.b32.xlu0 %v781, 32
      %v1459 = vpop.permute.xlu0 %1458
      %1460 = vrot.lane.b32.xlu0 %v782, 32
      %v1461 = vpop.permute.xlu0 %1460
      %1462 = vrot.lane.b32.xlu0 %v783, 32
      %v1463 = vpop.permute.xlu0 %1462
      %1464 = vrot.lane.b32.xlu0 %v784, 32
      %v1465 = vpop.permute.xlu0 %1464
      %1466 = vrot.lane.b32.xlu0 %v785, 32
      %v1467 = vpop.permute.xlu0 %1466
      %1468 = vrot.lane.b32.xlu0 %v786, 32
      %v1469 = vpop.permute.xlu0 %1468
      %1470 = vrot.lane.b32.xlu0 %v787, 32
      %v1471 = vpop.permute.xlu0 %1470
      %1472 = vrot.lane.b32.xlu0 %v788, 32
      %v1473 = vpop.permute.xlu0 %1472
      %1474 = vrot.lane.b32.xlu0 %v789, 32
      %v1475 = vpop.permute.xlu0 %1474
      %1476 = vrot.lane.b32.xlu0 %v790, 32
      %v1477 = vpop.permute.xlu0 %1476
      %1478 = vrot.lane.b32.xlu0 %v791, 32
      %v1479 = vpop.permute.xlu0 %1478
      %1480 = vrot.lane.b32.xlu0 %v792, 32
      %v1481 = vpop.permute.xlu0 %1480
      %1482 = vrot.lane.b32.xlu0 %v793, 32
      %v1483 = vpop.permute.xlu0 %1482
      %1484 = vrot.lane.b32.xlu0 %v794, 32
      %v1485 = vpop.permute.xlu0 %1484
      %1486 = vrot.lane.b32.xlu0 %v795, 32
      %v1487 = vpop.permute.xlu0 %1486
      %1488 = vrot.lane.b32.xlu0 %v796, 32
      %v1489 = vpop.permute.xlu0 %1488
      %1490 = vrot.lane.b32.xlu0 %v797, 32
      %v1491 = vpop.permute.xlu0 %1490
      %1492 = vrot.lane.b32.xlu0 %v798, 32
      %v1493 = vpop.permute.xlu0 %1492
      %1494 = vrot.lane.b32.xlu0 %v799, 32
      %v1495 = vpop.permute.xlu0 %1494
      %1496 = vrot.lane.b32.xlu0 %v800, 32
      %v1497 = vpop.permute.xlu0 %1496
      %1498 = vrot.lane.b32.xlu0 %v801, 32
      %v1499 = vpop.permute.xlu0 %1498
      %1500 = vrot.lane.b32.xlu0 %v802, 32
      %v1501 = vpop.permute.xlu0 %1500
      %1502 = vrot.lane.b32.xlu0 %v803, 32
      %v1503 = vpop.permute.xlu0 %1502
      %1504 = vrot.lane.b32.xlu0 %v804, 32
      %v1505 = vpop.permute.xlu0 %1504
      %1506 = vrot.lane.b32.xlu0 %v805, 32
      %v1507 = vpop.permute.xlu0 %1506
      %vm1556 = vcmask 326913
      %1557 = vst.msk [vmem:[#allocation2 - $0x1] sm:$0xfe] %vm1556, %v1413
      %vm1558 = vcmask 326912
      %1559 = vst.msk [vmem:[#allocation2 + $0x7] sm:$0xff] %vm1558, %v1415
      %vm1560 = vcmask 319744
      %1561 = vst.msk [vmem:[#allocation2 + $0xf] sm:$0x1] %vm1560, %v1417
      %1562 = vst.msk [vmem:[#allocation2 + $0xf] sm:$0xfe] %vm1556, %v1419
      %1563 = vst.msk [vmem:[#allocation2 + $0x17] sm:$0xff] %vm1558, %v1421
      %1564 = vst.msk [vmem:[#allocation2 + $0x1f] sm:$0x1] %vm1560, %v1423
      %1565 = vst.msk [vmem:[#allocation2 + $0x1f] sm:$0xfe] %vm1556, %v1425
      %1566 = vst.msk [vmem:[#allocation2 + $0x27] sm:$0xff] %vm1558, %v1427
      %1567 = vst.msk [vmem:[#allocation2 + $0x2f] sm:$0x1] %vm1560, %v1429
      %1568 = vst.msk [vmem:[#allocation2 + $0x2f] sm:$0xfe] %vm1556, %v1431
      %1569 = vst.msk [vmem:[#allocation2 + $0x37] sm:$0xff] %vm1558, %v1433
      %1570 = vst.msk [vmem:[#allocation2 + $0x3f] sm:$0x1] %vm1560, %v1435
      %1571 = vst.msk [vmem:[#allocation2 + $0x3f] sm:$0xfe] %vm1556, %v1437
      %1572 = vst.msk [vmem:[#allocation2 + $0x47] sm:$0xff] %vm1558, %v1439
      %1573 = vst.msk [vmem:[#allocation2 + $0x4f] sm:$0x1] %vm1560, %v1441
      %1574 = vst.msk [vmem:[#allocation2 + $0x4f] sm:$0xfe] %vm1556, %v1443
      %1575 = vst.msk [vmem:[#allocation2 + $0x57] sm:$0xff] %vm1558, %v1445
      %1576 = vst.msk [vmem:[#allocation2 + $0x5f] sm:$0x1] %vm1560, %v1447
      %1577 = vst.msk [vmem:[#allocation2 + $0x5f] sm:$0xfe] %vm1556, %v1449
      %1578 = vst.msk [vmem:[#allocation2 + $0x67] sm:$0xff] %vm1558, %v1451
      %1579 = vst.msk [vmem:[#allocation2 + $0x6f] sm:$0x1] %vm1560, %v1453
      %1580 = vst.msk [vmem:[#allocation2 + $0x6f] sm:$0xfe] %vm1556, %v1455
      %1581 = vst.msk [vmem:[#allocation2 + $0x77] sm:$0xff] %vm1558, %v1457
      %1582 = vst.msk [vmem:[#allocation2 + $0x7f] sm:$0x1] %vm1560, %v1459
      %1583 = vst.msk [vmem:[#allocation2 + $0x7f] sm:$0xfe] %vm1556, %v1461
      %1584 = vst.msk [vmem:[#allocation2 + $0x87] sm:$0xff] %vm1558, %v1463
      %1585 = vst.msk [vmem:[#allocation2 + $0x8f] sm:$0x1] %vm1560, %v1465
      %1586 = vst.msk [vmem:[#allocation2 + $0x8f] sm:$0xfe] %vm1556, %v1467
      %1587 = vst.msk [vmem:[#allocation2 + $0x97] sm:$0xff] %vm1558, %v1469
      %1588 = vst.msk [vmem:[#allocation2 + $0x9f] sm:$0x1] %vm1560, %v1471
      %1589 = vst.msk [vmem:[#allocation2 + $0x9f] sm:$0xfe] %vm1556, %v1473
      %1590 = vst.msk [vmem:[#allocation2 + $0xa7] sm:$0xff] %vm1558, %v1475
      %1591 = vst.msk [vmem:[#allocation2 + $0xaf] sm:$0x1] %vm1560, %v1477
      %1592 = vst.msk [vmem:[#allocation2 + $0xaf] sm:$0xfe] %vm1556, %v1479
      %1593 = vst.msk [vmem:[#allocation2 + $0xb7] sm:$0xff] %vm1558, %v1481
      %1594 = vst.msk [vmem:[#allocation2 + $0xbf] sm:$0x1] %vm1560, %v1483
      %1595 = vst.msk [vmem:[#allocation2 + $0xbf] sm:$0xfe] %vm1556, %v1485
      %1596 = vst.msk [vmem:[#allocation2 + $0xc7] sm:$0xff] %vm1558, %v1487
      %1597 = vst.msk [vmem:[#allocation2 + $0xcf] sm:$0x1] %vm1560, %v1489
      %1598 = vst.msk [vmem:[#allocation2 + $0xcf] sm:$0xfe] %vm1556, %v1491
      %1599 = vst.msk [vmem:[#allocation2 + $0xd7] sm:$0xff] %vm1558, %v1493
      %1600 = vst.msk [vmem:[#allocation2 + $0xdf] sm:$0x1] %vm1560, %v1495
      %1601 = vst.msk [vmem:[#allocation2 + $0xdf] sm:$0xfe] %vm1556, %v1497
      %1602 = vst.msk [vmem:[#allocation2 + $0xe7] sm:$0xff] %vm1558, %v1499
      %1603 = vst.msk [vmem:[#allocation2 + $0xef] sm:$0x1] %vm1560, %v1501
      %1604 = vst.msk [vmem:[#allocation2 + $0xef] sm:$0xfe] %vm1556, %v1503
      %1605 = vst.msk [vmem:[#allocation2 + $0xf7] sm:$0xff] %vm1558, %v1505
      %1606 = vst.msk [vmem:[#allocation2 + $0xff] sm:$0x1] %vm1560, %v1507
      %1607 = vrot.lane.b32.xlu0 %v758, 40
      %v1608 = vpop.permute.xlu0 %1607
      %1609 = vrot.lane.b32.xlu0 %v759, 40
      %v1610 = vpop.permute.xlu0 %1609
      %1611 = vrot.lane.b32.xlu0 %v760, 40
      %v1612 = vpop.permute.xlu0 %1611
      %1613 = vrot.lane.b32.xlu0 %v761, 40
      %v1614 = vpop.permute.xlu0 %1613
      %1615 = vrot.lane.b32.xlu0 %v762, 40
      %v1616 = vpop.permute.xlu0 %1615
      %1617 = vrot.lane.b32.xlu0 %v763, 40
      %v1618 = vpop.permute.xlu0 %1617
      %1619 = vrot.lane.b32.xlu0 %v764, 40
      %v1620 = vpop.permute.xlu0 %1619
      %1621 = vrot.lane.b32.xlu0 %v765, 40
      %v1622 = vpop.permute.xlu0 %1621
      %1623 = vrot.lane.b32.xlu0 %v766, 40
      %v1624 = vpop.permute.xlu0 %1623
      %1625 = vrot.lane.b32.xlu0 %v767, 40
      %v1626 = vpop.permute.xlu0 %1625
      %1627 = vrot.lane.b32.xlu0 %v768, 40
      %v1628 = vpop.permute.xlu0 %1627
      %1629 = vrot.lane.b32.xlu0 %v769, 40
      %v1630 = vpop.permute.xlu0 %1629
      %1631 = vrot.lane.b32.xlu0 %v770, 40
      %v1632 = vpop.permute.xlu0 %1631
      %1633 = vrot.lane.b32.xlu0 %v771, 40
      %v1634 = vpop.permute.xlu0 %1633
      %1635 = vrot.lane.b32.xlu0 %v772, 40
      %v1636 = vpop.permute.xlu0 %1635
      %1637 = vrot.lane.b32.xlu0 %v773, 40
      %v1638 = vpop.permute.xlu0 %1637
      %1639 = vrot.lane.b32.xlu0 %v774, 40
      %v1640 = vpop.permute.xlu0 %1639
      %1641 = vrot.lane.b32.xlu0 %v775, 40
      %v1642 = vpop.permute.xlu0 %1641
      %1643 = vrot.lane.b32.xlu0 %v776, 40
      %v1644 = vpop.permute.xlu0 %1643
      %1645 = vrot.lane.b32.xlu0 %v777, 40
      %v1646 = vpop.permute.xlu0 %1645
      %1647 = vrot.lane.b32.xlu0 %v778, 40
      %v1648 = vpop.permute.xlu0 %1647
      %1649 = vrot.lane.b32.xlu0 %v779, 40
      %v1650 = vpop.permute.xlu0 %1649
      %1651 = vrot.lane.b32.xlu0 %v780, 40
      %v1652 = vpop.permute.xlu0 %1651
      %1653 = vrot.lane.b32.xlu0 %v781, 40
      %v1654 = vpop.permute.xlu0 %1653
      %1655 = vrot.lane.b32.xlu0 %v782, 40
      %v1656 = vpop.permute.xlu0 %1655
      %1657 = vrot.lane.b32.xlu0 %v783, 40
      %v1658 = vpop.permute.xlu0 %1657
      %1659 = vrot.lane.b32.xlu0 %v784, 40
      %v1660 = vpop.permute.xlu0 %1659
      %1661 = vrot.lane.b32.xlu0 %v785, 40
      %v1662 = vpop.permute.xlu0 %1661
      %1663 = vrot.lane.b32.xlu0 %v786, 40
      %v1664 = vpop.permute.xlu0 %1663
      %1665 = vrot.lane.b32.xlu0 %v787, 40
      %v1666 = vpop.permute.xlu0 %1665
      %1667 = vrot.lane.b32.xlu0 %v788, 40
      %v1668 = vpop.permute.xlu0 %1667
      %1669 = vrot.lane.b32.xlu0 %v789, 40
      %v1670 = vpop.permute.xlu0 %1669
      %1671 = vrot.lane.b32.xlu0 %v790, 40
      %v1672 = vpop.permute.xlu0 %1671
      %1673 = vrot.lane.b32.xlu0 %v791, 40
      %v1674 = vpop.permute.xlu0 %1673
      %1675 = vrot.lane.b32.xlu0 %v792, 40
      %v1676 = vpop.permute.xlu0 %1675
      %1677 = vrot.lane.b32.xlu0 %v793, 40
      %v1678 = vpop.permute.xlu0 %1677
      %1679 = vrot.lane.b32.xlu0 %v794, 40
      %v1680 = vpop.permute.xlu0 %1679
      %1681 = vrot.lane.b32.xlu0 %v795, 40
      %v1682 = vpop.permute.xlu0 %1681
      %1683 = vrot.lane.b32.xlu0 %v796, 40
      %v1684 = vpop.permute.xlu0 %1683
      %1685 = vrot.lane.b32.xlu0 %v797, 40
      %v1686 = vpop.permute.xlu0 %1685
      %1687 = vrot.lane.b32.xlu0 %v798, 40
      %v1688 = vpop.permute.xlu0 %1687
      %1689 = vrot.lane.b32.xlu0 %v799, 40
      %v1690 = vpop.permute.xlu0 %1689
      %1691 = vrot.lane.b32.xlu0 %v800, 40
      %v1692 = vpop.permute.xlu0 %1691
      %1693 = vrot.lane.b32.xlu0 %v801, 40
      %v1694 = vpop.permute.xlu0 %1693
      %1695 = vrot.lane.b32.xlu0 %v802, 40
      %v1696 = vpop.permute.xlu0 %1695
      %1697 = vrot.lane.b32.xlu0 %v803, 40
      %v1698 = vpop.permute.xlu0 %1697
      %1699 = vrot.lane.b32.xlu0 %v804, 40
      %v1700 = vpop.permute.xlu0 %1699
      %1701 = vrot.lane.b32.xlu0 %v805, 40
      %v1702 = vpop.permute.xlu0 %1701
      %vm1751 = vcmask 392514
      %1752 = vst.msk [vmem:[#allocation2 - $0x2] sm:$0xfc] %vm1751, %v1608
      %vm1753 = vcmask 392512
      %1754 = vst.msk [vmem:[#allocation2 + $0x6] sm:$0xff] %vm1753, %v1610
      %vm1755 = vcmask 386368
      %1756 = vst.msk [vmem:[#allocation2 + $0xe] sm:$0x3] %vm1755, %v1612
      %1757 = vst.msk [vmem:[#allocation2 + $0xe] sm:$0xfc] %vm1751, %v1614
      %1758 = vst.msk [vmem:[#allocation2 + $0x16] sm:$0xff] %vm1753, %v1616
      %1759 = vst.msk [vmem:[#allocation2 + $0x1e] sm:$0x3] %vm1755, %v1618
      %1760 = vst.msk [vmem:[#allocation2 + $0x1e] sm:$0xfc] %vm1751, %v1620
      %1761 = vst.msk [vmem:[#allocation2 + $0x26] sm:$0xff] %vm1753, %v1622
      %1762 = vst.msk [vmem:[#allocation2 + $0x2e] sm:$0x3] %vm1755, %v1624
      %1763 = vst.msk [vmem:[#allocation2 + $0x2e] sm:$0xfc] %vm1751, %v1626
      %1764 = vst.msk [vmem:[#allocation2 + $0x36] sm:$0xff] %vm1753, %v1628
      %1765 = vst.msk [vmem:[#allocation2 + $0x3e] sm:$0x3] %vm1755, %v1630
      %1766 = vst.msk [vmem:[#allocation2 + $0x3e] sm:$0xfc] %vm1751, %v1632
      %1767 = vst.msk [vmem:[#allocation2 + $0x46] sm:$0xff] %vm1753, %v1634
      %1768 = vst.msk [vmem:[#allocation2 + $0x4e] sm:$0x3] %vm1755, %v1636
      %1769 = vst.msk [vmem:[#allocation2 + $0x4e] sm:$0xfc] %vm1751, %v1638
      %1770 = vst.msk [vmem:[#allocation2 + $0x56] sm:$0xff] %vm1753, %v1640
      %1771 = vst.msk [vmem:[#allocation2 + $0x5e] sm:$0x3] %vm1755, %v1642
      %1772 = vst.msk [vmem:[#allocation2 + $0x5e] sm:$0xfc] %vm1751, %v1644
      %1773 = vst.msk [vmem:[#allocation2 + $0x66] sm:$0xff] %vm1753, %v1646
      %1774 = vst.msk [vmem:[#allocation2 + $0x6e] sm:$0x3] %vm1755, %v1648
      %1775 = vst.msk [vmem:[#allocation2 + $0x6e] sm:$0xfc] %vm1751, %v1650
      %1776 = vst.msk [vmem:[#allocation2 + $0x76] sm:$0xff] %vm1753, %v1652
      %1777 = vst.msk [vmem:[#allocation2 + $0x7e] sm:$0x3] %vm1755, %v1654
      %1778 = vst.msk [vmem:[#allocation2 + $0x7e] sm:$0xfc] %vm1751, %v1656
      %1779 = vst.msk [vmem:[#allocation2 + $0x86] sm:$0xff] %vm1753, %v1658
      %1780 = vst.msk [vmem:[#allocation2 + $0x8e] sm:$0x3] %vm1755, %v1660
      %1781 = vst.msk [vmem:[#allocation2 + $0x8e] sm:$0xfc] %vm1751, %v1662
      %1782 = vst.msk [vmem:[#allocation2 + $0x96] sm:$0xff] %vm1753, %v1664
      %1783 = vst.msk [vmem:[#allocation2 + $0x9e] sm:$0x3] %vm1755, %v1666
      %1784 = vst.msk [vmem:[#allocation2 + $0x9e] sm:$0xfc] %vm1751, %v1668
      %1785 = vst.msk [vmem:[#allocation2 + $0xa6] sm:$0xff] %vm1753, %v1670
      %1786 = vst.msk [vmem:[#allocation2 + $0xae] sm:$0x3] %vm1755, %v1672
      %1787 = vst.msk [vmem:[#allocation2 + $0xae] sm:$0xfc] %vm1751, %v1674
      %1788 = vst.msk [vmem:[#allocation2 + $0xb6] sm:$0xff] %vm1753, %v1676
      %1789 = vst.msk [vmem:[#allocation2 + $0xbe] sm:$0x3] %vm1755, %v1678
      %1790 = vst.msk [vmem:[#allocation2 + $0xbe] sm:$0xfc] %vm1751, %v1680
      %1791 = vst.msk [vmem:[#allocation2 + $0xc6] sm:$0xff] %vm1753, %v1682
      %1792 = vst.msk [vmem:[#allocation2 + $0xce] sm:$0x3] %vm1755, %v1684
      %1793 = vst.msk [vmem:[#allocation2 + $0xce] sm:$0xfc] %vm1751, %v1686
      %1794 = vst.msk [vmem:[#allocation2 + $0xd6] sm:$0xff] %vm1753, %v1688
      %1795 = vst.msk [vmem:[#allocation2 + $0xde] sm:$0x3] %vm1755, %v1690
      %1796 = vst.msk [vmem:[#allocation2 + $0xde] sm:$0xfc] %vm1751, %v1692
      %1797 = vst.msk [vmem:[#allocation2 + $0xe6] sm:$0xff] %vm1753, %v1694
      %1798 = vst.msk [vmem:[#allocation2 + $0xee] sm:$0x3] %vm1755, %v1696
      %1799 = vst.msk [vmem:[#allocation2 + $0xee] sm:$0xfc] %vm1751, %v1698
      %1800 = vst.msk [vmem:[#allocation2 + $0xf6] sm:$0xff] %vm1753, %v1700
      %1801 = vst.msk [vmem:[#allocation2 + $0xfe] sm:$0x3] %vm1755, %v1702
      %1804 = vrot.lane.b32.xlu0 %v761, 48
      %v1805 = vpop.permute.xlu0 %1804
      %1806 = vrot.lane.b32.xlu0 %v762, 48
      %v1807 = vpop.permute.xlu0 %1806
      %1808 = vrot.lane.b32.xlu0 %v764, 48
      %v1809 = vpop.permute.xlu0 %1808
      %1810 = vrot.lane.b32.xlu0 %v765, 48
      %v1811 = vpop.permute.xlu0 %1810
      %1812 = vrot.lane.b32.xlu0 %v767, 48
      %v1813 = vpop.permute.xlu0 %1812
      %1814 = vrot.lane.b32.xlu0 %v768, 48
      %v1815 = vpop.permute.xlu0 %1814
      %1816 = vrot.lane.b32.xlu0 %v770, 48
      %v1817 = vpop.permute.xlu0 %1816
      %1818 = vrot.lane.b32.xlu0 %v771, 48
      %v1819 = vpop.permute.xlu0 %1818
      %1820 = vrot.lane.b32.xlu0 %v773, 48
      %v1821 = vpop.permute.xlu0 %1820
      %1822 = vrot.lane.b32.xlu0 %v774, 48
      %v1823 = vpop.permute.xlu0 %1822
      %1824 = vrot.lane.b32.xlu0 %v776, 48
      %v1825 = vpop.permute.xlu0 %1824
      %1826 = vrot.lane.b32.xlu0 %v777, 48
      %v1827 = vpop.permute.xlu0 %1826
      %1828 = vrot.lane.b32.xlu0 %v779, 48
      %v1829 = vpop.permute.xlu0 %1828
      %1830 = vrot.lane.b32.xlu0 %v780, 48
      %v1831 = vpop.permute.xlu0 %1830
      %1832 = vrot.lane.b32.xlu0 %v782, 48
      %v1833 = vpop.permute.xlu0 %1832
      %1834 = vrot.lane.b32.xlu0 %v783, 48
      %v1835 = vpop.permute.xlu0 %1834
      %1836 = vrot.lane.b32.xlu0 %v785, 48
      %v1837 = vpop.permute.xlu0 %1836
      %1838 = vrot.lane.b32.xlu0 %v786, 48
      %v1839 = vpop.permute.xlu0 %1838
      %1840 = vrot.lane.b32.xlu0 %v788, 48
      %v1841 = vpop.permute.xlu0 %1840
      %1842 = vrot.lane.b32.xlu0 %v789, 48
      %v1843 = vpop.permute.xlu0 %1842
      %1844 = vrot.lane.b32.xlu0 %v791, 48
      %v1845 = vpop.permute.xlu0 %1844
      %1846 = vrot.lane.b32.xlu0 %v792, 48
      %v1847 = vpop.permute.xlu0 %1846
      %1848 = vrot.lane.b32.xlu0 %v794, 48
      %v1849 = vpop.permute.xlu0 %1848
      %1850 = vrot.lane.b32.xlu0 %v795, 48
      %v1851 = vpop.permute.xlu0 %1850
      %1852 = vrot.lane.b32.xlu0 %v797, 48
      %v1853 = vpop.permute.xlu0 %1852
      %1854 = vrot.lane.b32.xlu0 %v798, 48
      %v1855 = vpop.permute.xlu0 %1854
      %1856 = vrot.lane.b32.xlu0 %v800, 48
      %v1857 = vpop.permute.xlu0 %1856
      %1858 = vrot.lane.b32.xlu0 %v801, 48
      %v1859 = vpop.permute.xlu0 %1858
      %1860 = vrot.lane.b32.xlu0 %v803, 48
      %v1861 = vpop.permute.xlu0 %1860
      %1862 = vrot.lane.b32.xlu0 %v804, 48
      %v1863 = vpop.permute.xlu0 %1862
      %1864 = vrot.lane.b32.xlu0 %v806, 48
      %v1865 = vpop.permute.xlu0 %1864
      %1866 = vrot.lane.b32.xlu0 %v807, 48
      %v1867 = vpop.permute.xlu0 %1866
      %vm1900 = vcmask 458112
      %1901 = vst.msk [vmem:[#allocation2] sm:$0xff] %vm1900, %v1805
      %1902 = vst.msk [vmem:[#allocation2 + $0x8] sm:$0xff] %vm1900, %v1807
      %1903 = vst.msk [vmem:[#allocation2 + $0x10] sm:$0xff] %vm1900, %v1809
      %1904 = vst.msk [vmem:[#allocation2 + $0x18] sm:$0xff] %vm1900, %v1811
      %1905 = vst.msk [vmem:[#allocation2 + $0x20] sm:$0xff] %vm1900, %v1813
      %1906 = vst.msk [vmem:[#allocation2 + $0x28] sm:$0xff] %vm1900, %v1815
      %1907 = vst.msk [vmem:[#allocation2 + $0x30] sm:$0xff] %vm1900, %v1817
      %1908 = vst.msk [vmem:[#allocation2 + $0x38] sm:$0xff] %vm1900, %v1819
      %1909 = vst.msk [vmem:[#allocation2 + $0x40] sm:$0xff] %vm1900, %v1821
      %1910 = vst.msk [vmem:[#allocation2 + $0x48] sm:$0xff] %vm1900, %v1823
      %1911 = vst.msk [vmem:[#allocation2 + $0x50] sm:$0xff] %vm1900, %v1825
      %1912 = vst.msk [vmem:[#allocation2 + $0x58] sm:$0xff] %vm1900, %v1827
      %1913 = vst.msk [vmem:[#allocation2 + $0x60] sm:$0xff] %vm1900, %v1829
      %1914 = vst.msk [vmem:[#allocation2 + $0x68] sm:$0xff] %vm1900, %v1831
      %1915 = vst.msk [vmem:[#allocation2 + $0x70] sm:$0xff] %vm1900, %v1833
      %1916 = vst.msk [vmem:[#allocation2 + $0x78] sm:$0xff] %vm1900, %v1835
      %1917 = vst.msk [vmem:[#allocation2 + $0x80] sm:$0xff] %vm1900, %v1837
      %1918 = vst.msk [vmem:[#allocation2 + $0x88] sm:$0xff] %vm1900, %v1839
      %1919 = vst.msk [vmem:[#allocation2 + $0x90] sm:$0xff] %vm1900, %v1841
      %1920 = vst.msk [vmem:[#allocation2 + $0x98] sm:$0xff] %vm1900, %v1843
      %1921 = vst.msk [vmem:[#allocation2 + $0xa0] sm:$0xff] %vm1900, %v1845
      %1922 = vst.msk [vmem:[#allocation2 + $0xa8] sm:$0xff] %vm1900, %v1847
      %1923 = vst.msk [vmem:[#allocation2 + $0xb0] sm:$0xff] %vm1900, %v1849
      %1924 = vst.msk [vmem:[#allocation2 + $0xb8] sm:$0xff] %vm1900, %v1851
      %1925 = vst.msk [vmem:[#allocation2 + $0xc0] sm:$0xff] %vm1900, %v1853
      %1926 = vst.msk [vmem:[#allocation2 + $0xc8] sm:$0xff] %vm1900, %v1855
      %1927 = vst.msk [vmem:[#allocation2 + $0xd0] sm:$0xff] %vm1900, %v1857
      %1928 = vst.msk [vmem:[#allocation2 + $0xd8] sm:$0xff] %vm1900, %v1859
      %1929 = vst.msk [vmem:[#allocation2 + $0xe0] sm:$0xff] %vm1900, %v1861
      %1930 = vst.msk [vmem:[#allocation2 + $0xe8] sm:$0xff] %vm1900, %v1863
      %1931 = vst.msk [vmem:[#allocation2 + $0xf0] sm:$0xff] %vm1900, %v1865
      %1932 = vst.msk [vmem:[#allocation2 + $0xf8] sm:$0xff] %vm1900, %v1867
      %1934 = vrot.lane.b32.xlu0 %v761, 56
      %v1935 = vpop.permute.xlu0 %1934
      %1936 = vrot.lane.b32.xlu0 %v762, 56
      %v1937 = vpop.permute.xlu0 %1936
      %1938 = vrot.lane.b32.xlu0 %v763, 56
      %v1939 = vpop.permute.xlu0 %1938
      %1940 = vrot.lane.b32.xlu0 %v764, 56
      %v1941 = vpop.permute.xlu0 %1940
      %1942 = vrot.lane.b32.xlu0 %v765, 56
      %v1943 = vpop.permute.xlu0 %1942
      %1944 = vrot.lane.b32.xlu0 %v766, 56
      %v1945 = vpop.permute.xlu0 %1944
      %1946 = vrot.lane.b32.xlu0 %v767, 56
      %v1947 = vpop.permute.xlu0 %1946
      %1948 = vrot.lane.b32.xlu0 %v768, 56
      %v1949 = vpop.permute.xlu0 %1948
      %1950 = vrot.lane.b32.xlu0 %v769, 56
      %v1951 = vpop.permute.xlu0 %1950
      %1952 = vrot.lane.b32.xlu0 %v770, 56
      %v1953 = vpop.permute.xlu0 %1952
      %1954 = vrot.lane.b32.xlu0 %v771, 56
      %v1955 = vpop.permute.xlu0 %1954
      %1956 = vrot.lane.b32.xlu0 %v772, 56
      %v1957 = vpop.permute.xlu0 %1956
      %1958 = vrot.lane.b32.xlu0 %v773, 56
      %v1959 = vpop.permute.xlu0 %1958
      %1960 = vrot.lane.b32.xlu0 %v774, 56
      %v1961 = vpop.permute.xlu0 %1960
      %1962 = vrot.lane.b32.xlu0 %v775, 56
      %v1963 = vpop.permute.xlu0 %1962
      %1964 = vrot.lane.b32.xlu0 %v776, 56
      %v1965 = vpop.permute.xlu0 %1964
      %1966 = vrot.lane.b32.xlu0 %v777, 56
      %v1967 = vpop.permute.xlu0 %1966
      %1968 = vrot.lane.b32.xlu0 %v778, 56
      %v1969 = vpop.permute.xlu0 %1968
      %1970 = vrot.lane.b32.xlu0 %v779, 56
      %v1971 = vpop.permute.xlu0 %1970
      %1972 = vrot.lane.b32.xlu0 %v780, 56
      %v1973 = vpop.permute.xlu0 %1972
      %1974 = vrot.lane.b32.xlu0 %v781, 56
      %v1975 = vpop.permute.xlu0 %1974
      %1976 = vrot.lane.b32.xlu0 %v782, 56
      %v1977 = vpop.permute.xlu0 %1976
      %1978 = vrot.lane.b32.xlu0 %v783, 56
      %v1979 = vpop.permute.xlu0 %1978
      %1980 = vrot.lane.b32.xlu0 %v784, 56
      %v1981 = vpop.permute.xlu0 %1980
      %1982 = vrot.lane.b32.xlu0 %v785, 56
      %v1983 = vpop.permute.xlu0 %1982
      %1984 = vrot.lane.b32.xlu0 %v786, 56
      %v1985 = vpop.permute.xlu0 %1984
      %1986 = vrot.lane.b32.xlu0 %v787, 56
      %v1987 = vpop.permute.xlu0 %1986
      %1988 = vrot.lane.b32.xlu0 %v788, 56
      %v1989 = vpop.permute.xlu0 %1988
      %1990 = vrot.lane.b32.xlu0 %v789, 56
      %v1991 = vpop.permute.xlu0 %1990
      %1992 = vrot.lane.b32.xlu0 %v790, 56
      %v1993 = vpop.permute.xlu0 %1992
      %1994 = vrot.lane.b32.xlu0 %v791, 56
      %v1995 = vpop.permute.xlu0 %1994
      %1996 = vrot.lane.b32.xlu0 %v792, 56
      %v1997 = vpop.permute.xlu0 %1996
      %1998 = vrot.lane.b32.xlu0 %v793, 56
      %v1999 = vpop.permute.xlu0 %1998
      %2000 = vrot.lane.b32.xlu0 %v794, 56
      %v2001 = vpop.permute.xlu0 %2000
      %2002 = vrot.lane.b32.xlu0 %v795, 56
      %v2003 = vpop.permute.xlu0 %2002
      %2004 = vrot.lane.b32.xlu0 %v796, 56
      %v2005 = vpop.permute.xlu0 %2004
      %2006 = vrot.lane.b32.xlu0 %v797, 56
      %v2007 = vpop.permute.xlu0 %2006
      %2008 = vrot.lane.b32.xlu0 %v798, 56
      %v2009 = vpop.permute.xlu0 %2008
      %2010 = vrot.lane.b32.xlu0 %v799, 56
      %v2011 = vpop.permute.xlu0 %2010
      %2012 = vrot.lane.b32.xlu0 %v800, 56
      %v2013 = vpop.permute.xlu0 %2012
      %2014 = vrot.lane.b32.xlu0 %v801, 56
      %v2015 = vpop.permute.xlu0 %2014
      %2016 = vrot.lane.b32.xlu0 %v802, 56
      %v2017 = vpop.permute.xlu0 %2016
      %2018 = vrot.lane.b32.xlu0 %v803, 56
      %v2019 = vpop.permute.xlu0 %2018
      %2020 = vrot.lane.b32.xlu0 %v804, 56
      %v2021 = vpop.permute.xlu0 %2020
      %2022 = vrot.lane.b32.xlu0 %v805, 56
      %v2023 = vpop.permute.xlu0 %2022
      %2024 = vrot.lane.b32.xlu0 %v806, 56
      %v2025 = vpop.permute.xlu0 %2024
      %2026 = vrot.lane.b32.xlu0 %v807, 56
      %v2027 = vpop.permute.xlu0 %2026
      %2028 = vrot.lane.b32.xlu0 %v808, 56
      %v2029 = vpop.permute.xlu0 %2028
      %vm2078 = vcmask 523713
      %2079 = vst.msk [vmem:[#allocation2 - $0x1] sm:$0xfe] %vm2078, %v1935
      %vm2080 = vcmask 523712
      %2081 = vst.msk [vmem:[#allocation2 + $0x7] sm:$0xff] %vm2080, %v1937
      %vm2082 = vcmask 516544
      %2083 = vst.msk [vmem:[#allocation2 + $0xf] sm:$0x1] %vm2082, %v1939
      %2084 = vst.msk [vmem:[#allocation2 + $0xf] sm:$0xfe] %vm2078, %v1941
      %2085 = vst.msk [vmem:[#allocation2 + $0x17] sm:$0xff] %vm2080, %v1943
      %2086 = vst.msk [vmem:[#allocation2 + $0x1f] sm:$0x1] %vm2082, %v1945
      %2087 = vst.msk [vmem:[#allocation2 + $0x1f] sm:$0xfe] %vm2078, %v1947
      %2088 = vst.msk [vmem:[#allocation2 + $0x27] sm:$0xff] %vm2080, %v1949
      %2089 = vst.msk [vmem:[#allocation2 + $0x2f] sm:$0x1] %vm2082, %v1951
      %2090 = vst.msk [vmem:[#allocation2 + $0x2f] sm:$0xfe] %vm2078, %v1953
      %2091 = vst.msk [vmem:[#allocation2 + $0x37] sm:$0xff] %vm2080, %v1955
      %2092 = vst.msk [vmem:[#allocation2 + $0x3f] sm:$0x1] %vm2082, %v1957
      %2093 = vst.msk [vmem:[#allocation2 + $0x3f] sm:$0xfe] %vm2078, %v1959
      %2094 = vst.msk [vmem:[#allocation2 + $0x47] sm:$0xff] %vm2080, %v1961
      %2095 = vst.msk [vmem:[#allocation2 + $0x4f] sm:$0x1] %vm2082, %v1963
      %2096 = vst.msk [vmem:[#allocation2 + $0x4f] sm:$0xfe] %vm2078, %v1965
      %2097 = vst.msk [vmem:[#allocation2 + $0x57] sm:$0xff] %vm2080, %v1967
      %2098 = vst.msk [vmem:[#allocation2 + $0x5f] sm:$0x1] %vm2082, %v1969
      %2099 = vst.msk [vmem:[#allocation2 + $0x5f] sm:$0xfe] %vm2078, %v1971
      %2100 = vst.msk [vmem:[#allocation2 + $0x67] sm:$0xff] %vm2080, %v1973
      %2101 = vst.msk [vmem:[#allocation2 + $0x6f] sm:$0x1] %vm2082, %v1975
      %2102 = vst.msk [vmem:[#allocation2 + $0x6f] sm:$0xfe] %vm2078, %v1977
      %2103 = vst.msk [vmem:[#allocation2 + $0x77] sm:$0xff] %vm2080, %v1979
      %2104 = vst.msk [vmem:[#allocation2 + $0x7f] sm:$0x1] %vm2082, %v1981
      %2105 = vst.msk [vmem:[#allocation2 + $0x7f] sm:$0xfe] %vm2078, %v1983
      %2106 = vst.msk [vmem:[#allocation2 + $0x87] sm:$0xff] %vm2080, %v1985
      %2107 = vst.msk [vmem:[#allocation2 + $0x8f] sm:$0x1] %vm2082, %v1987
      %2108 = vst.msk [vmem:[#allocation2 + $0x8f] sm:$0xfe] %vm2078, %v1989
      %2109 = vst.msk [vmem:[#allocation2 + $0x97] sm:$0xff] %vm2080, %v1991
      %2110 = vst.msk [vmem:[#allocation2 + $0x9f] sm:$0x1] %vm2082, %v1993
      %2111 = vst.msk [vmem:[#allocation2 + $0x9f] sm:$0xfe] %vm2078, %v1995
      %2112 = vst.msk [vmem:[#allocation2 + $0xa7] sm:$0xff] %vm2080, %v1997
      %2113 = vst.msk [vmem:[#allocation2 + $0xaf] sm:$0x1] %vm2082, %v1999
      %2114 = vst.msk [vmem:[#allocation2 + $0xaf] sm:$0xfe] %vm2078, %v2001
      %2115 = vst.msk [vmem:[#allocation2 + $0xb7] sm:$0xff] %vm2080, %v2003
      %2116 = vst.msk [vmem:[#allocation2 + $0xbf] sm:$0x1] %vm2082, %v2005
      %2117 = vst.msk [vmem:[#allocation2 + $0xbf] sm:$0xfe] %vm2078, %v2007
      %2118 = vst.msk [vmem:[#allocation2 + $0xc7] sm:$0xff] %vm2080, %v2009
      %2119 = vst.msk [vmem:[#allocation2 + $0xcf] sm:$0x1] %vm2082, %v2011
      %2120 = vst.msk [vmem:[#allocation2 + $0xcf] sm:$0xfe] %vm2078, %v2013
      %2121 = vst.msk [vmem:[#allocation2 + $0xd7] sm:$0xff] %vm2080, %v2015
      %2122 = vst.msk [vmem:[#allocation2 + $0xdf] sm:$0x1] %vm2082, %v2017
      %2123 = vst.msk [vmem:[#allocation2 + $0xdf] sm:$0xfe] %vm2078, %v2019
      %2124 = vst.msk [vmem:[#allocation2 + $0xe7] sm:$0xff] %vm2080, %v2021
      %2125 = vst.msk [vmem:[#allocation2 + $0xef] sm:$0x1] %vm2082, %v2023
      %2126 = vst.msk [vmem:[#allocation2 + $0xef] sm:$0xfe] %vm2078, %v2025
      %2127 = vst.msk [vmem:[#allocation2 + $0xf7] sm:$0xff] %vm2080, %v2027
      %2128 = vst.msk [vmem:[#allocation2 + $0xff] sm:$0x1] %vm2082, %v2029
      %2129 = vrot.lane.b32.xlu0 %v761, 64
      %v2130 = vpop.permute.xlu0 %2129
      %2131 = vrot.lane.b32.xlu0 %v762, 64
      %v2132 = vpop.permute.xlu0 %2131
      %2133 = vrot.lane.b32.xlu0 %v763, 64
      %v2134 = vpop.permute.xlu0 %2133
      %2135 = vrot.lane.b32.xlu0 %v764, 64
      %v2136 = vpop.permute.xlu0 %2135
      %2137 = vrot.lane.b32.xlu0 %v765, 64
      %v2138 = vpop.permute.xlu0 %2137
      %2139 = vrot.lane.b32.xlu0 %v766, 64
      %v2140 = vpop.permute.xlu0 %2139
      %2141 = vrot.lane.b32.xlu0 %v767, 64
      %v2142 = vpop.permute.xlu0 %2141
      %2143 = vrot.lane.b32.xlu0 %v768, 64
      %v2144 = vpop.permute.xlu0 %2143
      %2145 = vrot.lane.b32.xlu0 %v769, 64
      %v2146 = vpop.permute.xlu0 %2145
      %2147 = vrot.lane.b32.xlu0 %v770, 64
      %v2148 = vpop.permute.xlu0 %2147
      %2149 = vrot.lane.b32.xlu0 %v771, 64
      %v2150 = vpop.permute.xlu0 %2149
      %2151 = vrot.lane.b32.xlu0 %v772, 64
      %v2152 = vpop.permute.xlu0 %2151
      %2153 = vrot.lane.b32.xlu0 %v773, 64
      %v2154 = vpop.permute.xlu0 %2153
      %2155 = vrot.lane.b32.xlu0 %v774, 64
      %v2156 = vpop.permute.xlu0 %2155
      %2157 = vrot.lane.b32.xlu0 %v775, 64
      %v2158 = vpop.permute.xlu0 %2157
      %2159 = vrot.lane.b32.xlu0 %v776, 64
      %v2160 = vpop.permute.xlu0 %2159
      %2161 = vrot.lane.b32.xlu0 %v777, 64
      %v2162 = vpop.permute.xlu0 %2161
      %2163 = vrot.lane.b32.xlu0 %v778, 64
      %v2164 = vpop.permute.xlu0 %2163
      %2165 = vrot.lane.b32.xlu0 %v779, 64
      %v2166 = vpop.permute.xlu0 %2165
      %2167 = vrot.lane.b32.xlu0 %v780, 64
      %v2168 = vpop.permute.xlu0 %2167
      %2169 = vrot.lane.b32.xlu0 %v781, 64
      %v2170 = vpop.permute.xlu0 %2169
      %2171 = vrot.lane.b32.xlu0 %v782, 64
      %v2172 = vpop.permute.xlu0 %2171
      %2173 = vrot.lane.b32.xlu0 %v783, 64
      %v2174 = vpop.permute.xlu0 %2173
      %2175 = vrot.lane.b32.xlu0 %v784, 64
      %v2176 = vpop.permute.xlu0 %2175
      %2177 = vrot.lane.b32.xlu0 %v785, 64
      %v2178 = vpop.permute.xlu0 %2177
      %2179 = vrot.lane.b32.xlu0 %v786, 64
      %v2180 = vpop.permute.xlu0 %2179
      %2181 = vrot.lane.b32.xlu0 %v787, 64
      %v2182 = vpop.permute.xlu0 %2181
      %2183 = vrot.lane.b32.xlu0 %v788, 64
      %v2184 = vpop.permute.xlu0 %2183
      %2185 = vrot.lane.b32.xlu0 %v789, 64
      %v2186 = vpop.permute.xlu0 %2185
      %2187 = vrot.lane.b32.xlu0 %v790, 64
      %v2188 = vpop.permute.xlu0 %2187
      %2189 = vrot.lane.b32.xlu0 %v791, 64
      %v2190 = vpop.permute.xlu0 %2189
      %2191 = vrot.lane.b32.xlu0 %v792, 64
      %v2192 = vpop.permute.xlu0 %2191
      %2193 = vrot.lane.b32.xlu0 %v793, 64
      %v2194 = vpop.permute.xlu0 %2193
      %2195 = vrot.lane.b32.xlu0 %v794, 64
      %v2196 = vpop.permute.xlu0 %2195
      %2197 = vrot.lane.b32.xlu0 %v795, 64
      %v2198 = vpop.permute.xlu0 %2197
      %2199 = vrot.lane.b32.xlu0 %v796, 64
      %v2200 = vpop.permute.xlu0 %2199
      %2201 = vrot.lane.b32.xlu0 %v797, 64
      %v2202 = vpop.permute.xlu0 %2201
      %2203 = vrot.lane.b32.xlu0 %v798, 64
      %v2204 = vpop.permute.xlu0 %2203
      %2205 = vrot.lane.b32.xlu0 %v799, 64
      %v2206 = vpop.permute.xlu0 %2205
      %2207 = vrot.lane.b32.xlu0 %v800, 64
      %v2208 = vpop.permute.xlu0 %2207
      %2209 = vrot.lane.b32.xlu0 %v801, 64
      %v2210 = vpop.permute.xlu0 %2209
      %2211 = vrot.lane.b32.xlu0 %v802, 64
      %v2212 = vpop.permute.xlu0 %2211
      %2213 = vrot.lane.b32.xlu0 %v803, 64
      %v2214 = vpop.permute.xlu0 %2213
      %2215 = vrot.lane.b32.xlu0 %v804, 64
      %v2216 = vpop.permute.xlu0 %2215
      %2217 = vrot.lane.b32.xlu0 %v805, 64
      %v2218 = vpop.permute.xlu0 %2217
      %2219 = vrot.lane.b32.xlu0 %v806, 64
      %v2220 = vpop.permute.xlu0 %2219
      %2221 = vrot.lane.b32.xlu0 %v807, 64
      %v2222 = vpop.permute.xlu0 %2221
      %2223 = vrot.lane.b32.xlu0 %v808, 64
      %v2224 = vpop.permute.xlu0 %2223
      %vm2273 = vcmask 589314
      %2274 = vst.msk [vmem:[#allocation2 - $0x2] sm:$0xfc] %vm2273, %v2130
      %vm2275 = vcmask 589312
      %2276 = vst.msk [vmem:[#allocation2 + $0x6] sm:$0xff] %vm2275, %v2132
      %vm2277 = vcmask 583168
      %2278 = vst.msk [vmem:[#allocation2 + $0xe] sm:$0x3] %vm2277, %v2134
      %2279 = vst.msk [vmem:[#allocation2 + $0xe] sm:$0xfc] %vm2273, %v2136
      %2280 = vst.msk [vmem:[#allocation2 + $0x16] sm:$0xff] %vm2275, %v2138
      %2281 = vst.msk [vmem:[#allocation2 + $0x1e] sm:$0x3] %vm2277, %v2140
      %2282 = vst.msk [vmem:[#allocation2 + $0x1e] sm:$0xfc] %vm2273, %v2142
      %2283 = vst.msk [vmem:[#allocation2 + $0x26] sm:$0xff] %vm2275, %v2144
      %2284 = vst.msk [vmem:[#allocation2 + $0x2e] sm:$0x3] %vm2277, %v2146
      %2285 = vst.msk [vmem:[#allocation2 + $0x2e] sm:$0xfc] %vm2273, %v2148
      %2286 = vst.msk [vmem:[#allocation2 + $0x36] sm:$0xff] %vm2275, %v2150
      %2287 = vst.msk [vmem:[#allocation2 + $0x3e] sm:$0x3] %vm2277, %v2152
      %2288 = vst.msk [vmem:[#allocation2 + $0x3e] sm:$0xfc] %vm2273, %v2154
      %2289 = vst.msk [vmem:[#allocation2 + $0x46] sm:$0xff] %vm2275, %v2156
      %2290 = vst.msk [vmem:[#allocation2 + $0x4e] sm:$0x3] %vm2277, %v2158
      %2291 = vst.msk [vmem:[#allocation2 + $0x4e] sm:$0xfc] %vm2273, %v2160
      %2292 = vst.msk [vmem:[#allocation2 + $0x56] sm:$0xff] %vm2275, %v2162
      %2293 = vst.msk [vmem:[#allocation2 + $0x5e] sm:$0x3] %vm2277, %v2164
      %2294 = vst.msk [vmem:[#allocation2 + $0x5e] sm:$0xfc] %vm2273, %v2166
      %2295 = vst.msk [vmem:[#allocation2 + $0x66] sm:$0xff] %vm2275, %v2168
      %2296 = vst.msk [vmem:[#allocation2 + $0x6e] sm:$0x3] %vm2277, %v2170
      %2297 = vst.msk [vmem:[#allocation2 + $0x6e] sm:$0xfc] %vm2273, %v2172
      %2298 = vst.msk [vmem:[#allocation2 + $0x76] sm:$0xff] %vm2275, %v2174
      %2299 = vst.msk [vmem:[#allocation2 + $0x7e] sm:$0x3] %vm2277, %v2176
      %2300 = vst.msk [vmem:[#allocation2 + $0x7e] sm:$0xfc] %vm2273, %v2178
      %2301 = vst.msk [vmem:[#allocation2 + $0x86] sm:$0xff] %vm2275, %v2180
      %2302 = vst.msk [vmem:[#allocation2 + $0x8e] sm:$0x3] %vm2277, %v2182
      %2303 = vst.msk [vmem:[#allocation2 + $0x8e] sm:$0xfc] %vm2273, %v2184
      %2304 = vst.msk [vmem:[#allocation2 + $0x96] sm:$0xff] %vm2275, %v2186
      %2305 = vst.msk [vmem:[#allocation2 + $0x9e] sm:$0x3] %vm2277, %v2188
      %2306 = vst.msk [vmem:[#allocation2 + $0x9e] sm:$0xfc] %vm2273, %v2190
      %2307 = vst.msk [vmem:[#allocation2 + $0xa6] sm:$0xff] %vm2275, %v2192
      %2308 = vst.msk [vmem:[#allocation2 + $0xae] sm:$0x3] %vm2277, %v2194
      %2309 = vst.msk [vmem:[#allocation2 + $0xae] sm:$0xfc] %vm2273, %v2196
      %2310 = vst.msk [vmem:[#allocation2 + $0xb6] sm:$0xff] %vm2275, %v2198
      %2311 = vst.msk [vmem:[#allocation2 + $0xbe] sm:$0x3] %vm2277, %v2200
      %2312 = vst.msk [vmem:[#allocation2 + $0xbe] sm:$0xfc] %vm2273, %v2202
      %2313 = vst.msk [vmem:[#allocation2 + $0xc6] sm:$0xff] %vm2275, %v2204
      %2314 = vst.msk [vmem:[#allocation2 + $0xce] sm:$0x3] %vm2277, %v2206
      %2315 = vst.msk [vmem:[#allocation2 + $0xce] sm:$0xfc] %vm2273, %v2208
      %2316 = vst.msk [vmem:[#allocation2 + $0xd6] sm:$0xff] %vm2275, %v2210
      %2317 = vst.msk [vmem:[#allocation2 + $0xde] sm:$0x3] %vm2277, %v2212
      %2318 = vst.msk [vmem:[#allocation2 + $0xde] sm:$0xfc] %vm2273, %v2214
      %2319 = vst.msk [vmem:[#allocation2 + $0xe6] sm:$0xff] %vm2275, %v2216
      %2320 = vst.msk [vmem:[#allocation2 + $0xee] sm:$0x3] %vm2277, %v2218
      %2321 = vst.msk [vmem:[#allocation2 + $0xee] sm:$0xfc] %vm2273, %v2220
      %2322 = vst.msk [vmem:[#allocation2 + $0xf6] sm:$0xff] %vm2275, %v2222
      %2323 = vst.msk [vmem:[#allocation2 + $0xfe] sm:$0x3] %vm2277, %v2224
      %v2324 = vld [vmem:[#allocation2] sm:$0xff]
      %v2325 = vld [vmem:[#allocation2 + $0x8] sm:$0xff]
      %v2326 = vld [vmem:[#allocation2 + $0x10] sm:$0xff]
      %v2327 = vld [vmem:[#allocation2 + $0x18] sm:$0xff]
      %v2328 = vld [vmem:[#allocation2 + $0x20] sm:$0xff]
      %v2329 = vld [vmem:[#allocation2 + $0x28] sm:$0xff]
      %v2330 = vld [vmem:[#allocation2 + $0x30] sm:$0xff]
      %v2331 = vld [vmem:[#allocation2 + $0x38] sm:$0xff]
      %v2332 = vld [vmem:[#allocation2 + $0x40] sm:$0xff]
      %v2333 = vld [vmem:[#allocation2 + $0x48] sm:$0xff]
      %v2334 = vld [vmem:[#allocation2 + $0x50] sm:$0xff]
      %v2335 = vld [vmem:[#allocation2 + $0x58] sm:$0xff]
      %v2336 = vld [vmem:[#allocation2 + $0x60] sm:$0xff]
      %v2337 = vld [vmem:[#allocation2 + $0x68] sm:$0xff]
      %v2338 = vld [vmem:[#allocation2 + $0x70] sm:$0xff]
      %v2339 = vld [vmem:[#allocation2 + $0x78] sm:$0xff]
      %v2340 = vld [vmem:[#allocation2 + $0x80] sm:$0xff]
      %v2341 = vld [vmem:[#allocation2 + $0x88] sm:$0xff]
      %v2342 = vld [vmem:[#allocation2 + $0x90] sm:$0xff]
      %v2343 = vld [vmem:[#allocation2 + $0x98] sm:$0xff]
      %v2344 = vld [vmem:[#allocation2 + $0xa0] sm:$0xff]
      %v2345 = vld [vmem:[#allocation2 + $0xa8] sm:$0xff]
      %v2346 = vld [vmem:[#allocation2 + $0xb0] sm:$0xff]
      %v2347 = vld [vmem:[#allocation2 + $0xb8] sm:$0xff]
      %v2348 = vld [vmem:[#allocation2 + $0xc0] sm:$0xff]
      %v2349 = vld [vmem:[#allocation2 + $0xc8] sm:$0xff]
      %v2350 = vld [vmem:[#allocation2 + $0xd0] sm:$0xff]
      %v2351 = vld [vmem:[#allocation2 + $0xd8] sm:$0xff]
      %v2352 = vld [vmem:[#allocation2 + $0xe0] sm:$0xff]
      %v2353 = vld [vmem:[#allocation2 + $0xe8] sm:$0xff]
      %v2354 = vld [vmem:[#allocation2 + $0xf0] sm:$0xff]
      %v2355 = vld [vmem:[#allocation2 + $0xf8] sm:$0xff]
      %v2356 = vld [vmem:[%s4] sm:$0xff]
      %vm2357 = vcmask 588800
      %v2359 = vsel %vm2357, %v2356, 0
      %v2362 = vsel %vm2357, %v2324, 0
      %v2365 = vsel %vm2357, %v2325, 0
      %v2368 = vsel %vm2357, %v2326, 0
      %v2371 = vsel %vm2357, %v2327, 0
      %v2374 = vsel %vm2357, %v2328, 0
      %v2377 = vsel %vm2357, %v2329, 0
      %v2380 = vsel %vm2357, %v2330, 0
      %v2383 = vsel %vm2357, %v2331, 0
      %v2386 = vsel %vm2357, %v2332, 0
      %v2389 = vsel %vm2357, %v2333, 0
      %v2392 = vsel %vm2357, %v2334, 0
      %v2395 = vsel %vm2357, %v2335, 0
      %v2398 = vsel %vm2357, %v2336, 0
      %v2401 = vsel %vm2357, %v2337, 0
      %v2404 = vsel %vm2357, %v2338, 0
      %v2407 = vsel %vm2357, %v2339, 0
      %v2410 = vsel %vm2357, %v2340, 0
      %v2413 = vsel %vm2357, %v2341, 0
      %v2416 = vsel %vm2357, %v2342, 0
      %v2419 = vsel %vm2357, %v2343, 0
      %v2422 = vsel %vm2357, %v2344, 0
      %v2425 = vsel %vm2357, %v2345, 0
      %v2428 = vsel %vm2357, %v2346, 0
      %v2431 = vsel %vm2357, %v2347, 0
      %v2434 = vsel %vm2357, %v2348, 0
      %v2437 = vsel %vm2357, %v2349, 0
      %v2440 = vsel %vm2357, %v2350, 0
      %v2443 = vsel %vm2357, %v2351, 0
      %v2446 = vsel %vm2357, %v2352, 0
      %v2449 = vsel %vm2357, %v2353, 0
      %v2452 = vsel %vm2357, %v2354, 0
      %v2455 = vsel %vm2357, %v2355, 0
      %2457 = vmatprep.subr.mxu0 0.0
      %2458 = vmatpush1.xpose.msra.mxu0 %v2407
      %2459 = vmatprep.subr.mxu0 0.0
      %2460 = vmatpush1.xpose.msra.mxu0 %v2404
      %2461 = vmatprep.subr.mxu0 0.0
      %2462 = vmatpush1.xpose.msra.mxu0 %v2401
      %2463 = vmatprep.subr.mxu0 0.0
      %2464 = vmatpush1.xpose.msra.mxu0 %v2398
      %2465 = vmatprep.subr.mxu0 0.0
      %2466 = vmatpush1.xpose.msra.mxu0 %v2395
      %2467 = vmatprep.subr.mxu0 0.0
      %2468 = vmatpush1.xpose.msra.mxu0 %v2392
      %2469 = vmatprep.subr.mxu0 0.0
      %2470 = vmatpush1.xpose.msra.mxu0 %v2389
      %2471 = vmatprep.subr.mxu0 0.0
      %2472 = vmatpush1.xpose.msra.mxu0 %v2386
      %2473 = vmatprep.subr.mxu0 0.0
      %2474 = vmatpush1.xpose.msra.mxu0 %v2383
      %2475 = vmatprep.subr.mxu0 0.0
      %2476 = vmatpush1.xpose.msra.mxu0 %v2380
      %2477 = vmatprep.subr.mxu0 0.0
      %2478 = vmatpush1.xpose.msra.mxu0 %v2377
      %2479 = vmatprep.subr.mxu0 0.0
      %2480 = vmatpush1.xpose.msra.mxu0 %v2374
      %2481 = vmatprep.subr.mxu0 0.0
      %2482 = vmatpush1.xpose.msra.mxu0 %v2371
      %2483 = vmatprep.subr.mxu0 0.0
      %2484 = vmatpush1.xpose.msra.mxu0 %v2368
      %2485 = vmatprep.subr.mxu0 0.0
      %2486 = vmatpush1.xpose.msra.mxu0 %v2365
      %2487 = vmatprep.subr.mxu0 0.0
      %2488 = vmatpush1.xpose.msra.mxu0 %v2362
      %2489 = vmatprep.subr.mxu0 0.0
      %2490 = vmatpush2.xpose.msra.mxu0 %v2455
      %2491 = vmatprep.subr.mxu0 0.0
      %2492 = vmatpush2.xpose.msra.mxu0 %v2452
      %2493 = vmatprep.subr.mxu0 0.0
      %2494 = vmatpush2.xpose.msra.mxu0 %v2449
      %2495 = vmatprep.subr.mxu0 0.0
      %2496 = vmatpush2.xpose.msra.mxu0 %v2446
      %2497 = vmatprep.subr.mxu0 0.0
      %2498 = vmatpush2.xpose.msra.mxu0 %v2443
      %2499 = vmatprep.subr.mxu0 0.0
      %2500 = vmatpush2.xpose.msra.mxu0 %v2440
      %2501 = vmatprep.subr.mxu0 0.0
      %2502 = vmatpush2.xpose.msra.mxu0 %v2437
      %2503 = vmatprep.subr.mxu0 0.0
      %2504 = vmatpush2.xpose.msra.mxu0 %v2434
      %2505 = vmatprep.subr.mxu0 0.0
      %2506 = vmatpush2.xpose.msra.mxu0 %v2431
      %2507 = vmatprep.subr.mxu0 0.0
      %2508 = vmatpush2.xpose.msra.mxu0 %v2428
      %2509 = vmatprep.subr.mxu0 0.0
      %2510 = vmatpush2.xpose.msra.mxu0 %v2425
      %2511 = vmatprep.subr.mxu0 0.0
      %2512 = vmatpush2.xpose.msra.mxu0 %v2422
      %2513 = vmatprep.subr.mxu0 0.0
      %2514 = vmatpush2.xpose.msra.mxu0 %v2419
      %2515 = vmatprep.subr.mxu0 0.0
      %2516 = vmatpush2.xpose.msra.mxu0 %v2416
      %2517 = vmatprep.subr.mxu0 0.0
      %2518 = vmatpush2.xpose.msra.mxu0 %v2413
      %2519 = vmatprep.subr.mxu0 0.0
      %2520 = vmatpush2.xpose.msra.mxu0 %v2410
      %2521 = vmatprep.mubr.f32.mxu0 0.0
      %2522 = vmatmul.mubr.f32.gmra.mxu0 %v2359
      %v2523 = vpop.f32.mrf.mxu0
      %v2524 = vadd.f32 0.0, %v2523
      %v2525 = vpop.f32.mrf.mxu0
      %v2526 = vadd.f32 0.0, %v2525
      %2527 = vdwg.mxu0
      %2528 = vst [vmem:[%s246] sm:$0xff] %v2524
      %2529 = vst [vmem:[%s246 + $0x8] sm:$0xff] %v2526
      %s2530 = smul.u32 2, %s21
      %p2531 = scmp.lt.s32.totalorder %s20, 1
      %s2532 = scalar_select %p2531, %s20, 1
      %p2533 = scmp.lt.s32.totalorder %s2530, 1
      %s2534 = scalar_select %p2533, %s2530, 1
      %s2535 = smul.addr %s2532, 2
      %s2536 = sadd.s32 %s2534, %s2535
      %s2537 = smul.addr %s2536, 8
      %s2538 = scalar_lea.vmem %s5, %s2537
      // Predicated region
      $region41: #{dpn_conv_forward.1} parent=39 // pred_check
        %p2539 = pneg %p158
      $region42: #{dpn_conv_forward.1} parent=39 // pred_check_branch
        %2541 = sbr.rel (%p2539) target = $region44
      $region43: #{dpn_conv_forward.1} parent=39 // pred_region
        %s2542 = smul.u32 2, %s21
      $region44: #{dpn_conv_forward.1} parent=39 // pred_fallthru
        _
    $region40: #{dpn_conv_forward.1} parent=5 // pred_fallthru
      _
    %p2543 = scmp.le.s32.totalorder 2, %s11
    // Predicated region
    $region45: #{dpn_conv_forward.1} parent=5 // pred_check
      %p2544 = pneg %p2543
    $region46: #{dpn_conv_forward.1} parent=5 // pred_check_branch
      %2546 = sbr.rel (%p2544) target = $region48
    $region47: #{dpn_conv_forward.1} parent=5 // pred_region
      %s2547 = ssub.s32 %s11, 2
      // Predicated region
      $region49: #{dpn_conv_forward.1} parent=47 // pred_check
        %p2548 = pneg %p164
      $region50: #{dpn_conv_forward.1} parent=47 // pred_check_branch
        %2550 = sbr.rel (%p2548) target = $region52
      $region51: #{dpn_conv_forward.1} parent=47 // pred_region
        %s2551 = smul.u32 2, %s23
        %p2552 = scmp.lt.s32.totalorder %s22, 1
        %s2553 = scalar_select %p2552, %s22, 1
        %p2554 = scmp.lt.s32.totalorder %s2551, 1
        %s2555 = scalar_select %p2554, %s2551, 1
        %s2556 = smul.addr %s2553, 2
        %s2557 = sadd.s32 %s2555, %s2556
        %s2558 = smul.addr %s2557, 8
        %s2559 = scalar_lea.vmem %s5, %s2558
      $region52: #{dpn_conv_forward.1} parent=47 // pred_fallthru
        _
    $region48: #{dpn_conv_forward.1} parent=5 // pred_fallthru
      _
  $region6: #{dpn_conv_forward.1} parent=0 // loop_footer
    %s15 = sadd.s32 1, %s11
  $region7: #{dpn_conv_forward.1} parent=0 // loop_footer_branch
    %10 = sbr.rel target = $region3
  $region8: #{dpn_conv_forward.1} parent=0 // loop_exit
    _

</llo_original>
